<compile_context>
chip_gen: v7x
topology: tpu7x:2x2x1
jax: 0.10.0
libtpu: 0.0.40
codegen_flags: <defaults>
</compile_context>

<pallas_src>
import math
import functools

import jax
import jax.numpy as jnp
from jax.experimental import pallas as pl
from jax.experimental.pallas import tpu as pltpu


_NEG_BIG = -1e30  # additive key-padding bias; matches torch's -inf masking for
                  # all non-degenerate rows while avoiding inf-inf NaNs


# ------------------------------- helpers -------------------------------------
def _layernorm(x, gamma, beta, eps=1e-5):
    mu = jnp.mean(x, axis=-1, keepdims=True)
    var = jnp.mean((x - mu) ** 2, axis=-1, keepdims=True)
    return (x - mu) * jax.lax.rsqrt(var + eps) * gamma + beta


def _gelu_exact(x):
    # nn.GELU() default is the exact erf formulation.
    return 0.5 * x * (1.0 + jax.lax.erf(x * (1.0 / math.sqrt(2.0))))


# ----------------------------- Pallas kernels --------------------------------
def attn_block_kernel(x_ref, bias_ref,
                      wq_ref, bq_ref, wk_ref, bk_ref, wv_ref, bv_ref,
                      wo_ref, bo_ref, w1_ref, b1_ref, w2_ref, b2_ref,
                      g1_ref, be1_ref, g2_ref, be2_ref,
                      o_ref, *, num_heads):
    H = num_heads
    _, S, E = x_ref.shape

    x = x_ref[0]                                    # (S, E), f32
    xh = jnp.broadcast_to(x[None], (H, S, E))       # heads batched on leading dim

    # q/k/v projections directly in (H, S, Dh) layout.  Weights were
    # pre-transposed + per-head reshaped on the host; q-scale already folded in.
    q = jnp.einsum("hse,hed->hsd", xh, wq_ref[...],
                   preferred_element_type=jnp.float32) + bq_ref[...]
    k = jnp.einsum("hse,hed->hsd", xh, wk_ref[...],
                   preferred_element_type=jnp.float32) + bk_ref[...]
    v = jnp.einsum("hse,hed->hsd", xh, wv_ref[...],
                   preferred_element_type=jnp.float32) + bv_ref[...]

    # --- attention, batched over heads (key-padding bias is additive) ---
    s = jnp.einsum("hqd,hkd->hqk", q, k,
                   preferred_element_type=jnp.float32)               # (H, S, S)
    s = s + bias_ref[...]                                            # (1,1,S) bcast
    m = jnp.max(s, axis=-1, keepdims=True)
    p = jnp.exp(s - m)
    l = jnp.sum(p, axis=-1, keepdims=True)
    p = p * pl.reciprocal(l, approx=True)                            # EUP slot

    o = jnp.einsum("hqk,hkd->hqd", p, v,
                   preferred_element_type=jnp.float32)               # (H, S, Dh)
    # output projection: per-head (S,Dh)x(Dh,E), summed over heads (no concat)
    attn = jnp.sum(jnp.einsum("hsd,hde->hse", o, wo_ref[...],
                              preferred_element_type=jnp.float32),
                   axis=0) + bo_ref[...]                             # (S, E)

    x1 = _layernorm(x + attn, g1_ref[...], be1_ref[...])

    # --- FFN (full-width MXU matmuls; weights pre-transposed) ---
    h1 = _gelu_exact(jnp.dot(x1, w1_ref[...],
                             preferred_element_type=jnp.float32) + b1_ref[...])
    h2 = jnp.dot(h1, w2_ref[...],
                 preferred_element_type=jnp.float32) + b2_ref[...]

    x2 = _layernorm(x1 + h2, g2_ref[...], be2_ref[...])
    o_ref[0] = x2.astype(o_ref.dtype)


def pool_head_kernel(x_ref, keep_ref, wa_ref, ba_ref, wb_ref, bb_ref, o_ref):
    x = x_ref[...]                                   # (B, S, E)
    keep = keep_ref[...]                             # (B, S, 1): 1.0 keep / 0.0 pad
    denom = jnp.sum(keep, axis=1)                    # (B, 1)
    pooled = jnp.sum(x * keep, axis=1) / denom       # (B, E) masked mean over seq
    h = _gelu_exact(jnp.dot(pooled, wa_ref[...],
                            preferred_element_type=jnp.float32) + ba_ref[...])
    o_ref[...] = (jnp.dot(h, wb_ref[...],
                          preferred_element_type=jnp.float32)
                  + bb_ref[...]).astype(o_ref.dtype)


# ------------------------------ wrappers --------------------------------------
def attn_block_pallas(x, prepped, bias, *, num_heads):
    """One fused post-LN transformer block (self-attention + FFN)."""
    B, S, E = x.shape
    kernel = functools.partial(attn_block_kernel, num_heads=num_heads)

    def full(arr):
        return pl.BlockSpec(arr.shape, lambda b: (0,) * arr.ndim)

    in_specs = ([pl.BlockSpec((1, S, E), lambda b: (b, 0, 0)),
                 pl.BlockSpec((1, 1, S), lambda b: (b, 0, 0))]
                + [full(a) for a in prepped])

    return pl.pallas_call(
        kernel,
        out_shape=jax.ShapeDtypeStruct((B, S, E), x.dtype),
        grid=(B,),
        in_specs=in_specs,
        out_specs=pl.BlockSpec((1, S, E), lambda b: (b, 0, 0)),
        compiler_params=pltpu.CompilerParams(
            dimension_semantics=("parallel",),          # batch is independent
            vmem_limit_bytes=64 * 1024 * 1024),
    )(x, bias, *prepped)


def pool_head_pallas(x, keep, wa_t, ba, wb_t, bb):
    B = x.shape[0]
    return pl.pallas_call(
        pool_head_kernel,
        out_shape=jax.ShapeDtypeStruct((B, 1), x.dtype),
    )(x, keep, wa_t, ba, wb_t, bb)


def _padding_bias(mask):
    # (B, S) bool (True = padded) -> (B, 1, S) additive f32 bias
    return jnp.where(mask, jnp.float32(_NEG_BIG), jnp.float32(0.0))[:, None, :]


def simple_self_attn_pallas(x, prepped_blocks, bias, *, num_heads):
    # TODO(synk): prefetch block i+1 weights across pallas_call boundaries (P10).
    for pp in prepped_blocks:
        x = attn_block_pallas(x, pp, bias, num_heads=num_heads)
    return x


def plm_cat_mean_inf_pallas(x_hla, x_epi, mask_hla, mask_epi, prepped, *, num_heads):
    hla_pp, epi_pp, con_pp, head_pp = prepped
    B = x_hla.shape[0]

    x_hla = simple_self_attn_pallas(x_hla, hla_pp, _padding_bias(mask_hla),
                                    num_heads=num_heads)
    # epi stack is called with padding_mask=None in the torch forward
    zero_bias = jnp.zeros((B, 1, x_epi.shape[1]), jnp.float32)
    x_epi = simple_self_attn_pallas(x_epi, epi_pp, zero_bias, num_heads=num_heads)

    mask = jnp.concatenate([mask_hla, mask_epi], axis=-1)        # (B, S_h + S_e)
    x = jnp.concatenate([x_hla, x_epi], axis=1)
    x = simple_self_attn_pallas(x, con_pp, _padding_bias(mask), num_heads=num_heads)

    keep = jnp.logical_not(mask).astype(jnp.float32)[:, :, None]  # (B, S, 1)
    wa_t, ba, wb_t, bb = head_pp
    return pool_head_pallas(x, keep, wa_t, ba, wb_t, bb)


# ------------------------- deterministic parameters ---------------------------
def init_block_params(key, embed_dim):
    """Raw parameters in PyTorch layout (out_features, in_features)."""
    E = embed_dim
    ks = jax.random.split(key, 8)
    s = 0.02
    w_in = jax.random.normal(ks[0], (3 * E, E), jnp.float32) * s   # in_proj_weight
    b_in = jax.random.normal(ks[1], (3 * E,), jnp.float32) * s     # in_proj_bias
    w_out = jax.random.normal(ks[2], (E, E), jnp.float32) * s      # out_proj.weight
    b_out = jax.random.normal(ks[3], (E,), jnp.float32) * s        # out_proj.bias
    w1 = jax.random.normal(ks[4], (4 * E, E), jnp.float32) * s     # ffn.0.weight
    b1 = jax.random.normal(ks[5], (4 * E,), jnp.float32) * s       # ffn.0.bias
    w2 = jax.random.normal(ks[6], (E, 4 * E), jnp.float32) * s     # ffn.2.weight
    b2 = jax.random.normal(ks[7], (E,), jnp.float32) * s           # ffn.2.bias
    g1 = jnp.ones((E,), jnp.float32)
    be1 = jnp.zeros((E,), jnp.float32)
    g2 = jnp.ones((E,), jnp.float32)
    be2 = jnp.zeros((E,), jnp.float32)
    return (w_in, b_in, w_out, b_out, w1, b1, w2, b2, g1, be1, g2, be2)


def prep_block_params(raw, num_heads):
    """Host-side layout plumbing: pre-transpose, split per head, fold q-scale."""
    (w_in, b_in, w_out, b_out, w1, b1, w2, b2, g1, be1, g2, be2) = raw
    E = w_out.shape[0]
    H = num_heads
    Dh = E // H
    scale = 1.0 / math.sqrt(Dh)

    def per_head_w(w):                  # (E_out=E, E_in=E) -> (H, E_in, Dh)
        return jnp.transpose(w.T.reshape(E, H, Dh), (1, 0, 2))

    def per_head_b(b):                  # (E,) -> (H, 1, Dh)
        return b.reshape(H, 1, Dh)

    wq, wk, wv = w_in[:E], w_in[E:2 * E], w_in[2 * E:]
    bq, bk, bv = b_in[:E], b_in[E:2 * E], b_in[2 * E:]
    wq_h = per_head_w(wq) * scale       # fold 1/sqrt(Dh) into q projection
    bq_h = per_head_b(bq) * scale
    wk_h, bk_h = per_head_w(wk), per_head_b(bk)
    wv_h, bv_h = per_head_w(wv), per_head_b(bv)
    wo_h = w_out.T.reshape(H, Dh, E)    # per-head output projection
    bo = b_out.reshape(1, E)
    return (wq_h, bq_h, wk_h, bk_h, wv_h, bv_h, wo_h, bo,
            w1.T, b1.reshape(1, 4 * E), w2.T, b2.reshape(1, E),
            g1.reshape(1, E), be1.reshape(1, E),
            g2.reshape(1, E), be2.reshape(1, E))


def init_head_params(key, embed_dim):
    E = embed_dim
    ks = jax.random.split(key, 4)
    s = 0.02
    wa = jax.random.normal(ks[0], (E // 2, E), jnp.float32) * s
    ba = jax.random.normal(ks[1], (E // 2,), jnp.float32) * s
    wb = jax.random.normal(ks[2], (1, E // 2), jnp.float32) * s
    bb = jax.random.normal(ks[3], (1,), jnp.float32) * s
    return (wa, ba, wb, bb)


def prep_head_params(raw):
    wa, ba, wb, bb = raw
    return (wa.T, ba.reshape(1, -1), wb.T, bb.reshape(1, 1))


# ----------------------------- pure-JAX reference -----------------------------
def block_ref(x, raw, num_heads, key_padding_mask=None):
    (w_in, b_in, w_out, b_out, w1, b1, w2, b2, g1, be1, g2, be2) = raw
    B, S, E = x.shape
    H = num_heads
    Dh = E // H
    qkv = x @ w_in.T + b_in
    q, k, v = qkv[..., :E], qkv[..., E:2 * E], qkv[..., 2 * E:]

    def heads(t):  # (B, S, E) -> (B, H, S, Dh)
        return t.reshape(B, S, H, Dh).transpose(0, 2, 1, 3)

    qh, kh, vh = heads(q), heads(k), heads(v)
    s = jnp.einsum("bhqd,bhkd->bhqk", qh, kh) / math.sqrt(Dh)
    if key_padding_mask is not None:
        s = s + jnp.where(key_padding_mask, jnp.float32(_NEG_BIG),
                          jnp.float32(0.0))[:, None, None, :]
    p = jax.nn.softmax(s, axis=-1)
    o = jnp.einsum("bhqk,bhkd->bhqd", p, vh).transpose(0, 2, 1, 3).reshape(B, S, E)
    attn = o @ w_out.T + b_out

    def ln(t, g, b):
        mu = jnp.mean(t, -1, keepdims=True)
        var = jnp.mean((t - mu) ** 2, -1, keepdims=True)
        return (t - mu) / jnp.sqrt(var + 1e-5) * g + b

    x1 = ln(x + attn, g1, be1)
    h = jax.nn.gelu(x1 @ w1.T + b1, approximate=False)
    x2 = ln(x1 + (h @ w2.T + b2), g2, be2)
    return x2


def plm_cat_mean_inf_ref(x_hla, x_epi, mask_hla, mask_epi, raw_params, num_heads):
    hla_raw, epi_raw, con_raw, head_raw = raw_params
    for p in hla_raw:
        x_hla = block_ref(x_hla, p, num_heads, mask_hla)
    for p in epi_raw:
        x_epi = block_ref(x_epi, p, num_heads, None)
    mask = jnp.concatenate([mask_hla, mask_epi], axis=-1)
    x = jnp.concatenate([x_hla, x_epi], axis=1)
    for p in con_raw:
        x = block_ref(x, p, num_heads, mask)
    keep = jnp.logical_not(mask).astype(jnp.float32)[:, :, None]
    pooled = jnp.sum(x * keep, axis=1) / jnp.sum(keep, axis=1)
    wa, ba, wb, bb = head_raw
    h = jax.nn.gelu(pooled @ wa.T + ba, approximate=False)
    return h @ wb.T + bb


# ---------------------------------- main ---------------------------------------
if __name__ == "__main__":
    # Small shapes consistent with the module: embed_dim divisible by head_div.
    hla_dim = 128                       # == epi_dim == concat_dim
    head_div = 64
    num_heads = hla_dim // head_div     # 2 heads, Dh = 64
    B, S_hla, S_epi = 2, 8, 8
    n_hla_blocks, n_epi_blocks, n_con_blocks = 2, 2, 1

    key = jax.random.PRNGKey(0)
    k_xh, k_xe, k_p = jax.random.split(key, 3)
    x_hla = jax.random.normal(k_xh, (B, S_hla, hla_dim), jnp.float32)
    x_epi = jax.random.normal(k_xe, (B, S_epi, hla_dim), jnp.float32)
    # key-padding masks (True = padded); every sequence keeps >= 1 valid token
    mask_hla = jnp.zeros((B, S_hla), jnp.bool_).at[0, 6:].set(True).at[1, 5:].set(True)
    mask_epi = jnp.zeros((B, S_epi), jnp.bool_).at[0, 7:].set(True)

    n_total = n_hla_blocks + n_epi_blocks + n_con_blocks
    ks = jax.random.split(k_p, n_total + 1)
    hla_raw = [init_block_params(ks[i], hla_dim) for i in range(n_hla_blocks)]
    epi_raw = [init_block_params(ks[n_hla_blocks + i], hla_dim)
               for i in range(n_epi_blocks)]
    con_raw = [init_block_params(ks[n_hla_blocks + n_epi_blocks + i], hla_dim)
               for i in range(n_con_blocks)]
    head_raw = init_head_params(ks[-1], hla_dim)

    prepped = ([prep_block_params(p, num_heads) for p in hla_raw],
               [prep_block_params(p, num_heads) for p in epi_raw],
               [prep_block_params(p, num_heads) for p in con_raw],
               prep_head_params(head_raw))

    out = plm_cat_mean_inf_pallas(x_hla, x_epi, mask_hla, mask_epi, prepped,
                                  num_heads=num_heads)
    out = jax.block_until_ready(out)

    with jax.default_matmul_precision("highest"):
        ref = plm_cat_mean_inf_ref(x_hla, x_epi, mask_hla, mask_epi,
                                   (hla_raw, epi_raw, con_raw, head_raw), num_heads)
        ref = jax.block_until_ready(ref)

    assert out.shape == (B, 1)
    assert jnp.allclose(out, ref, rtol=1e-2, atol=1e-3), (out, ref)
    print("KERNEL_OK")
</pallas_src>

<mosaic_0001>
module attributes {stable_mosaic.version = 11 : i64} {
  func.func @attn_block_kernel(%arg0: i32, %arg1: memref<1x8x128xf32, #tpu.memory_space<vmem>>, %arg2: memref<1x1x8xf32, #tpu.memory_space<vmem>>, %arg3: memref<2x128x64xf32, #tpu.memory_space<vmem>>, %arg4: memref<2x1x64xf32, #tpu.memory_space<vmem>>, %arg5: memref<2x128x64xf32, #tpu.memory_space<vmem>>, %arg6: memref<2x1x64xf32, #tpu.memory_space<vmem>>, %arg7: memref<2x128x64xf32, #tpu.memory_space<vmem>>, %arg8: memref<2x1x64xf32, #tpu.memory_space<vmem>>, %arg9: memref<2x64x128xf32, #tpu.memory_space<vmem>>, %arg10: memref<1x128xf32, #tpu.memory_space<vmem>>, %arg11: memref<128x512xf32, #tpu.memory_space<vmem>>, %arg12: memref<1x512xf32, #tpu.memory_space<vmem>>, %arg13: memref<512x128xf32, #tpu.memory_space<vmem>>, %arg14: memref<1x128xf32, #tpu.memory_space<vmem>>, %arg15: memref<1x128xf32, #tpu.memory_space<vmem>>, %arg16: memref<1x128xf32, #tpu.memory_space<vmem>>, %arg17: memref<1x128xf32, #tpu.memory_space<vmem>>, %arg18: memref<1x128xf32, #tpu.memory_space<vmem>>, %arg19: memref<1x8x128xf32, #tpu.memory_space<vmem>>) attributes {dimension_semantics = [#tpu.dimension_semantics<parallel>], iteration_bounds = array<i64: 2>, scalar_prefetch = 0 : i64, scratch_operands = 0 : i64, tpu.core_type = #tpu.core_type<tc>, window_params = [{transform_indices = @transform_0, window_bounds = array<i64: 1, 8, 128>}, {transform_indices = @transform_1, window_bounds = array<i64: 1, 1, 8>}, {pipeline_mode = #tpu.pipeline_mode<synchronous>, transform_indices = @transform_2, window_bounds = array<i64: 2, 128, 64>}, {pipeline_mode = #tpu.pipeline_mode<synchronous>, transform_indices = @transform_3, window_bounds = array<i64: 2, 1, 64>}, {pipeline_mode = #tpu.pipeline_mode<synchronous>, transform_indices = @transform_4, window_bounds = array<i64: 2, 128, 64>}, {pipeline_mode = #tpu.pipeline_mode<synchronous>, transform_indices = @transform_5, window_bounds = array<i64: 2, 1, 64>}, {pipeline_mode = #tpu.pipeline_mode<synchronous>, transform_indices = @transform_6, window_bounds = array<i64: 2, 128, 64>}, {pipeline_mode = #tpu.pipeline_mode<synchronous>, transform_indices = @transform_7, window_bounds = array<i64: 2, 1, 64>}, {pipeline_mode = #tpu.pipeline_mode<synchronous>, transform_indices = @transform_8, window_bounds = array<i64: 2, 64, 128>}, {pipeline_mode = #tpu.pipeline_mode<synchronous>, transform_indices = @transform_9, window_bounds = array<i64: 1, 128>}, {pipeline_mode = #tpu.pipeline_mode<synchronous>, transform_indices = @transform_10, window_bounds = array<i64: 128, 512>}, {pipeline_mode = #tpu.pipeline_mode<synchronous>, transform_indices = @transform_11, window_bounds = array<i64: 1, 512>}, {pipeline_mode = #tpu.pipeline_mode<synchronous>, transform_indices = @transform_12, window_bounds = array<i64: 512, 128>}, {pipeline_mode = #tpu.pipeline_mode<synchronous>, transform_indices = @transform_13, window_bounds = array<i64: 1, 128>}, {pipeline_mode = #tpu.pipeline_mode<synchronous>, transform_indices = @transform_14, window_bounds = array<i64: 1, 128>}, {pipeline_mode = #tpu.pipeline_mode<synchronous>, transform_indices = @transform_15, window_bounds = array<i64: 1, 128>}, {pipeline_mode = #tpu.pipeline_mode<synchronous>, transform_indices = @transform_16, window_bounds = array<i64: 1, 128>}, {pipeline_mode = #tpu.pipeline_mode<synchronous>, transform_indices = @transform_17, window_bounds = array<i64: 1, 128>}, {transform_indices = @transform_18, window_bounds = array<i64: 1, 8, 128>}]} {
    %c0 = arith.constant 0 : index
    %c0_0 = arith.constant 0 : index
    %c0_1 = arith.constant 0 : index
    %0 = vector.load %arg1[%c0, %c0_0, %c0_1] : memref<1x8x128xf32, #tpu.memory_space<vmem>>, vector<1x8x128xf32>
    %1 = vector.shape_cast %0 : vector<1x8x128xf32> to vector<8x128xf32>
    %2 = vector.shape_cast %1 : vector<8x128xf32> to vector<1x8x128xf32>
    %3 = vector.shape_cast %2 : vector<1x8x128xf32> to vector<1x8x128xf32>
    %4 = vector.broadcast %3 : vector<1x8x128xf32> to vector<2x8x128xf32>
    %c0_2 = arith.constant 0 : index
    %c0_3 = arith.constant 0 : index
    %c0_4 = arith.constant 0 : index
    %5 = vector.load %arg3[%c0_2, %c0_3, %c0_4] : memref<2x128x64xf32, #tpu.memory_space<vmem>>, vector<2x128x64xf32>
    "tpu.trace_start"() <{level = 10 : i32, message = "hse,hed->hsd"}> : () -> ()
    %cst = arith.constant dense<0.000000e+00> : vector<2x8x64xf32>
    %6 = tpu.matmul %4, %5, %cst {dimension_numbers = #tpu.dot_dimension_numbers<[2], [1], [1], [2], [0, 0, 0, 1, 1, 2], [0], [0]>} : vector<2x8x128xf32>, vector<2x128x64xf32>, vector<2x8x64xf32> -> vector<2x8x64xf32>
    "tpu.trace_stop"() : () -> ()
    %c0_5 = arith.constant 0 : index
    %c0_6 = arith.constant 0 : index
    %c0_7 = arith.constant 0 : index
    %7 = vector.load %arg4[%c0_5, %c0_6, %c0_7] : memref<2x1x64xf32, #tpu.memory_space<vmem>>, vector<2x1x64xf32>
    %8 = vector.broadcast %7 : vector<2x1x64xf32> to vector<2x8x64xf32>
    %9 = arith.addf %6, %8 : vector<2x8x64xf32>
    %c0_8 = arith.constant 0 : index
    %c0_9 = arith.constant 0 : index
    %c0_10 = arith.constant 0 : index
    %10 = vector.load %arg5[%c0_8, %c0_9, %c0_10] : memref<2x128x64xf32, #tpu.memory_space<vmem>>, vector<2x128x64xf32>
    "tpu.trace_start"() <{level = 10 : i32, message = "hse,hed->hsd"}> : () -> ()
    %cst_11 = arith.constant dense<0.000000e+00> : vector<2x8x64xf32>
    %11 = tpu.matmul %4, %10, %cst_11 {dimension_numbers = #tpu.dot_dimension_numbers<[2], [1], [1], [2], [0, 0, 0, 1, 1, 2], [0], [0]>} : vector<2x8x128xf32>, vector<2x128x64xf32>, vector<2x8x64xf32> -> vector<2x8x64xf32>
    "tpu.trace_stop"() : () -> ()
    %c0_12 = arith.constant 0 : index
    %c0_13 = arith.constant 0 : index
    %c0_14 = arith.constant 0 : index
    %12 = vector.load %arg6[%c0_12, %c0_13, %c0_14] : memref<2x1x64xf32, #tpu.memory_space<vmem>>, vector<2x1x64xf32>
    %13 = vector.broadcast %12 : vector<2x1x64xf32> to vector<2x8x64xf32>
    %14 = arith.addf %11, %13 : vector<2x8x64xf32>
    %c0_15 = arith.constant 0 : index
    %c0_16 = arith.constant 0 : index
    %c0_17 = arith.constant 0 : index
    %15 = vector.load %arg7[%c0_15, %c0_16, %c0_17] : memref<2x128x64xf32, #tpu.memory_space<vmem>>, vector<2x128x64xf32>
    "tpu.trace_start"() <{level = 10 : i32, message = "hse,hed->hsd"}> : () -> ()
    %cst_18 = arith.constant dense<0.000000e+00> : vector<2x8x64xf32>
    %16 = tpu.matmul %4, %15, %cst_18 {dimension_numbers = #tpu.dot_dimension_numbers<[2], [1], [1], [2], [0, 0, 0, 1, 1, 2], [0], [0]>} : vector<2x8x128xf32>, vector<2x128x64xf32>, vector<2x8x64xf32> -> vector<2x8x64xf32>
    "tpu.trace_stop"() : () -> ()
    %c0_19 = arith.constant 0 : index
    %c0_20 = arith.constant 0 : index
    %c0_21 = arith.constant 0 : index
    %17 = vector.load %arg8[%c0_19, %c0_20, %c0_21] : memref<2x1x64xf32, #tpu.memory_space<vmem>>, vector<2x1x64xf32>
    %18 = vector.broadcast %17 : vector<2x1x64xf32> to vector<2x8x64xf32>
    %19 = arith.addf %16, %18 : vector<2x8x64xf32>
    "tpu.trace_start"() <{level = 10 : i32, message = "hqd,hkd->hqk"}> : () -> ()
    %cst_22 = arith.constant dense<0.000000e+00> : vector<2x8x8xf32>
    %20 = tpu.matmul %9, %14, %cst_22 {dimension_numbers = #tpu.dot_dimension_numbers<[2], [2], [1], [1], [0, 0, 0, 1, 1, 1], [0], [0]>} : vector<2x8x64xf32>, vector<2x8x64xf32>, vector<2x8x8xf32> -> vector<2x8x8xf32>
    "tpu.trace_stop"() : () -> ()
    %c0_23 = arith.constant 0 : index
    %c0_24 = arith.constant 0 : index
    %c0_25 = arith.constant 0 : index
    %21 = vector.load %arg2[%c0_23, %c0_24, %c0_25] : memref<1x1x8xf32, #tpu.memory_space<vmem>>, vector<1x1x8xf32>
    %22 = vector.broadcast %21 : vector<1x1x8xf32> to vector<2x8x8xf32>
    %23 = arith.addf %20, %22 : vector<2x8x8xf32>
    %cst_26 = arith.constant dense<0xFF800000> : vector<2x8xf32>
    %24 = vector.multi_reduction <maximumf>, %23, %cst_26 [2] : vector<2x8x8xf32> to vector<2x8xf32>
    %25 = vector.shape_cast %24 : vector<2x8xf32> to vector<2x8x1xf32>
    %26 = vector.broadcast %25 : vector<2x8x1xf32> to vector<2x8x8xf32>
    %27 = arith.subf %23, %26 : vector<2x8x8xf32>
    %28 = math.exp %27 : vector<2x8x8xf32>
    %cst_27 = arith.constant dense<0.000000e+00> : vector<2x8xf32>
    %29 = vector.multi_reduction <add>, %28, %cst_27 [2] : vector<2x8x8xf32> to vector<2x8xf32>
    %30 = vector.shape_cast %29 : vector<2x8xf32> to vector<2x8x1xf32>
    %31 = tpu.reciprocal %30 {approx = true} : vector<2x8x1xf32> -> vector<2x8x1xf32>
    %32 = vector.broadcast %31 : vector<2x8x1xf32> to vector<2x8x8xf32>
    %33 = arith.mulf %28, %32 : vector<2x8x8xf32>
    "tpu.trace_start"() <{level = 10 : i32, message = "hqk,hkd->hqd"}> : () -> ()
    %cst_28 = arith.constant dense<0.000000e+00> : vector<2x8x64xf32>
    %34 = tpu.matmul %33, %19, %cst_28 {dimension_numbers = #tpu.dot_dimension_numbers<[2], [1], [1], [2], [0, 0, 0, 1, 1, 2], [0], [0]>} : vector<2x8x8xf32>, vector<2x8x64xf32>, vector<2x8x64xf32> -> vector<2x8x64xf32>
    "tpu.trace_stop"() : () -> ()
    %c0_29 = arith.constant 0 : index
    %c0_30 = arith.constant 0 : index
    %c0_31 = arith.constant 0 : index
    %35 = vector.load %arg9[%c0_29, %c0_30, %c0_31] : memref<2x64x128xf32, #tpu.memory_space<vmem>>, vector<2x64x128xf32>
    "tpu.trace_start"() <{level = 10 : i32, message = "hsd,hde->hse"}> : () -> ()
    %cst_32 = arith.constant dense<0.000000e+00> : vector<2x8x128xf32>
    %36 = tpu.matmul %34, %35, %cst_32 {dimension_numbers = #tpu.dot_dimension_numbers<[2], [1], [1], [2], [0, 0, 0, 1, 1, 2], [0], [0]>} : vector<2x8x64xf32>, vector<2x64x128xf32>, vector<2x8x128xf32> -> vector<2x8x128xf32>
    "tpu.trace_stop"() : () -> ()
    %cst_33 = arith.constant dense<0.000000e+00> : vector<8x128xf32>
    %37 = vector.multi_reduction <add>, %36, %cst_33 [0] : vector<2x8x128xf32> to vector<8x128xf32>
    %c0_34 = arith.constant 0 : index
    %c0_35 = arith.constant 0 : index
    %38 = vector.load %arg10[%c0_34, %c0_35] : memref<1x128xf32, #tpu.memory_space<vmem>>, vector<1x128xf32>
    %39 = vector.broadcast %38 : vector<1x128xf32> to vector<8x128xf32>
    %40 = arith.addf %37, %39 : vector<8x128xf32>
    %41 = arith.addf %1, %40 : vector<8x128xf32>
    %c0_36 = arith.constant 0 : index
    %c0_37 = arith.constant 0 : index
    %42 = vector.load %arg15[%c0_36, %c0_37] : memref<1x128xf32, #tpu.memory_space<vmem>>, vector<1x128xf32>
    %c0_38 = arith.constant 0 : index
    %c0_39 = arith.constant 0 : index
    %43 = vector.load %arg16[%c0_38, %c0_39] : memref<1x128xf32, #tpu.memory_space<vmem>>, vector<1x128xf32>
    %cst_40 = arith.constant dense<0.000000e+00> : vector<8xf32>
    %44 = vector.multi_reduction <add>, %41, %cst_40 [1] : vector<8x128xf32> to vector<8xf32>
    %45 = vector.shape_cast %44 : vector<8xf32> to vector<8x1xf32>
    %cst_41 = arith.constant 1.280000e+02 : f32
    %46 = vector.broadcast %cst_41 : f32 to vector<8x1xf32>
    %47 = arith.divf %45, %46 : vector<8x1xf32>
    %48 = vector.broadcast %47 : vector<8x1xf32> to vector<8x128xf32>
    %49 = arith.subf %41, %48 : vector<8x128xf32>
    %50 = arith.mulf %49, %49 : vector<8x128xf32>
    %cst_42 = arith.constant dense<0.000000e+00> : vector<8xf32>
    %51 = vector.multi_reduction <add>, %50, %cst_42 [1] : vector<8x128xf32> to vector<8xf32>
    %52 = vector.shape_cast %51 : vector<8xf32> to vector<8x1xf32>
    %cst_43 = arith.constant 1.280000e+02 : f32
    %53 = vector.broadcast %cst_43 : f32 to vector<8x1xf32>
    %54 = arith.divf %52, %53 : vector<8x1xf32>
    %55 = vector.broadcast %47 : vector<8x1xf32> to vector<8x128xf32>
    %56 = arith.subf %41, %55 : vector<8x128xf32>
    %cst_44 = arith.constant 9.99999974E-6 : f32
    %57 = vector.broadcast %cst_44 : f32 to vector<8x1xf32>
    %58 = arith.addf %54, %57 : vector<8x1xf32>
    %59 = math.rsqrt %58 : vector<8x1xf32>
    %60 = vector.broadcast %59 : vector<8x1xf32> to vector<8x128xf32>
    %61 = arith.mulf %56, %60 : vector<8x128xf32>
    %62 = vector.broadcast %42 : vector<1x128xf32> to vector<8x128xf32>
    %63 = arith.mulf %61, %62 : vector<8x128xf32>
    %64 = vector.broadcast %43 : vector<1x128xf32> to vector<8x128xf32>
    %65 = arith.addf %63, %64 : vector<8x128xf32>
    %c0_45 = arith.constant 0 : index
    %c0_46 = arith.constant 0 : index
    %66 = vector.load %arg11[%c0_45, %c0_46] : memref<128x512xf32, #tpu.memory_space<vmem>>, vector<128x512xf32>
    %cst_47 = arith.constant dense<0.000000e+00> : vector<8x512xf32>
    %67 = tpu.matmul %65, %66, %cst_47 {dimension_numbers = #tpu.dot_dimension_numbers<[1], [0], [0], [1], [0, 0, 1, 1], [], []>} : vector<8x128xf32>, vector<128x512xf32>, vector<8x512xf32> -> vector<8x512xf32>
    %c0_48 = arith.constant 0 : index
    %c0_49 = arith.constant 0 : index
    %68 = vector.load %arg12[%c0_48, %c0_49] : memref<1x512xf32, #tpu.memory_space<vmem>>, vector<1x512xf32>
    %69 = vector.broadcast %68 : vector<1x512xf32> to vector<8x512xf32>
    %70 = arith.addf %67, %69 : vector<8x512xf32>
    %cst_50 = arith.constant 5.000000e-01 : f32
    %71 = vector.broadcast %cst_50 : f32 to vector<8x512xf32>
    %72 = arith.mulf %71, %70 : vector<8x512xf32>
    %cst_51 = arith.constant 0.707106769 : f32
    %73 = vector.broadcast %cst_51 : f32 to vector<8x512xf32>
    %74 = arith.mulf %70, %73 : vector<8x512xf32>
    %75 = math.erf %74 : vector<8x512xf32>
    %cst_52 = arith.constant 1.000000e+00 : f32
    %76 = vector.broadcast %cst_52 : f32 to vector<8x512xf32>
    %77 = arith.addf %76, %75 : vector<8x512xf32>
    %78 = arith.mulf %72, %77 : vector<8x512xf32>
    %c0_53 = arith.constant 0 : index
    %c0_54 = arith.constant 0 : index
    %79 = vector.load %arg13[%c0_53, %c0_54] : memref<512x128xf32, #tpu.memory_space<vmem>>, vector<512x128xf32>
    %cst_55 = arith.constant dense<0.000000e+00> : vector<8x128xf32>
    %80 = tpu.matmul %78, %79, %cst_55 {dimension_numbers = #tpu.dot_dimension_numbers<[1], [0], [0], [1], [0, 0, 1, 1], [], []>} : vector<8x512xf32>, vector<512x128xf32>, vector<8x128xf32> -> vector<8x128xf32>
    %c0_56 = arith.constant 0 : index
    %c0_57 = arith.constant 0 : index
    %81 = vector.load %arg14[%c0_56, %c0_57] : memref<1x128xf32, #tpu.memory_space<vmem>>, vector<1x128xf32>
    %82 = vector.broadcast %81 : vector<1x128xf32> to vector<8x128xf32>
    %83 = arith.addf %80, %82 : vector<8x128xf32>
    %84 = arith.addf %65, %83 : vector<8x128xf32>
    %c0_58 = arith.constant 0 : index
    %c0_59 = arith.constant 0 : index
    %85 = vector.load %arg17[%c0_58, %c0_59] : memref<1x128xf32, #tpu.memory_space<vmem>>, vector<1x128xf32>
    %c0_60 = arith.constant 0 : index
    %c0_61 = arith.constant 0 : index
    %86 = vector.load %arg18[%c0_60, %c0_61] : memref<1x128xf32, #tpu.memory_space<vmem>>, vector<1x128xf32>
    %cst_62 = arith.constant dense<0.000000e+00> : vector<8xf32>
    %87 = vector.multi_reduction <add>, %84, %cst_62 [1] : vector<8x128xf32> to vector<8xf32>
    %88 = vector.shape_cast %87 : vector<8xf32> to vector<8x1xf32>
    %cst_63 = arith.constant 1.280000e+02 : f32
    %89 = vector.broadcast %cst_63 : f32 to vector<8x1xf32>
    %90 = arith.divf %88, %89 : vector<8x1xf32>
    %91 = vector.broadcast %90 : vector<8x1xf32> to vector<8x128xf32>
    %92 = arith.subf %84, %91 : vector<8x128xf32>
    %93 = arith.mulf %92, %92 : vector<8x128xf32>
    %cst_64 = arith.constant dense<0.000000e+00> : vector<8xf32>
    %94 = vector.multi_reduction <add>, %93, %cst_64 [1] : vector<8x128xf32> to vector<8xf32>
    %95 = vector.shape_cast %94 : vector<8xf32> to vector<8x1xf32>
    %cst_65 = arith.constant 1.280000e+02 : f32
    %96 = vector.broadcast %cst_65 : f32 to vector<8x1xf32>
    %97 = arith.divf %95, %96 : vector<8x1xf32>
    %98 = vector.broadcast %90 : vector<8x1xf32> to vector<8x128xf32>
    %99 = arith.subf %84, %98 : vector<8x128xf32>
    %cst_66 = arith.constant 9.99999974E-6 : f32
    %100 = vector.broadcast %cst_66 : f32 to vector<8x1xf32>
    %101 = arith.addf %97, %100 : vector<8x1xf32>
    %102 = math.rsqrt %101 : vector<8x1xf32>
    %103 = vector.broadcast %102 : vector<8x1xf32> to vector<8x128xf32>
    %104 = arith.mulf %99, %103 : vector<8x128xf32>
    %105 = vector.broadcast %85 : vector<1x128xf32> to vector<8x128xf32>
    %106 = arith.mulf %104, %105 : vector<8x128xf32>
    %107 = vector.broadcast %86 : vector<1x128xf32> to vector<8x128xf32>
    %108 = arith.addf %106, %107 : vector<8x128xf32>
    %c0_67 = arith.constant 0 : index
    %c0_68 = arith.constant 0 : index
    %c0_69 = arith.constant 0 : index
    %109 = vector.load %arg19[%c0_67, %c0_68, %c0_69] : memref<1x8x128xf32, #tpu.memory_space<vmem>>, vector<1x8x128xf32>
    %110 = vector.shape_cast %109 : vector<1x8x128xf32> to vector<8x128xf32>
    %111 = vector.shape_cast %108 : vector<8x128xf32> to vector<1x8x128xf32>
    tpu.vector_store %arg19[%c0_67, %c0_68, %c0_69], %111 {strides = array<i32>} : memref<1x8x128xf32, #tpu.memory_space<vmem>>, vector<1x8x128xf32>,
    return
  }
  func.func @transform_0(%arg0: i32) -> (i32, i32, i32) {
    %c0_i32 = arith.constant 0 : i32
    %c0_i32_0 = arith.constant 0 : i32
    %c0_i32_1 = arith.constant 0 : i32
    return %arg0, %c0_i32, %c0_i32_0 : i32, i32, i32
  }
  func.func @transform_1(%arg0: i32) -> (i32, i32, i32) {
    %c0_i32 = arith.constant 0 : i32
    %c0_i32_0 = arith.constant 0 : i32
    %c0_i32_1 = arith.constant 0 : i32
    return %arg0, %c0_i32, %c0_i32_0 : i32, i32, i32
  }
  func.func @transform_2(%arg0: i32) -> (i32, i32, i32) {
    %c0_i32 = arith.constant 0 : i32
    %c0_i32_0 = arith.constant 0 : i32
    %c0_i32_1 = arith.constant 0 : i32
    %c0_i32_2 = arith.constant 0 : i32
    return %c0_i32, %c0_i32_0, %c0_i32_1 : i32, i32, i32
  }
  func.func @transform_3(%arg0: i32) -> (i32, i32, i32) {
    %c0_i32 = arith.constant 0 : i32
    %c0_i32_0 = arith.constant 0 : i32
    %c0_i32_1 = arith.constant 0 : i32
    %c0_i32_2 = arith.constant 0 : i32
    return %c0_i32, %c0_i32_0, %c0_i32_1 : i32, i32, i32
  }
  func.func @transform_4(%arg0: i32) -> (i32, i32, i32) {
    %c0_i32 = arith.constant 0 : i32
    %c0_i32_0 = arith.constant 0 : i32
    %c0_i32_1 = arith.constant 0 : i32
    %c0_i32_2 = arith.constant 0 : i32
    return %c0_i32, %c0_i32_0, %c0_i32_1 : i32, i32, i32
  }
  func.func @transform_5(%arg0: i32) -> (i32, i32, i32) {
    %c0_i32 = arith.constant 0 : i32
    %c0_i32_0 = arith.constant 0 : i32
    %c0_i32_1 = arith.constant 0 : i32
    %c0_i32_2 = arith.constant 0 : i32
    return %c0_i32, %c0_i32_0, %c0_i32_1 : i32, i32, i32
  }
  func.func @transform_6(%arg0: i32) -> (i32, i32, i32) {
    %c0_i32 = arith.constant 0 : i32
    %c0_i32_0 = arith.constant 0 : i32
    %c0_i32_1 = arith.constant 0 : i32
    %c0_i32_2 = arith.constant 0 : i32
    return %c0_i32, %c0_i32_0, %c0_i32_1 : i32, i32, i32
  }
  func.func @transform_7(%arg0: i32) -> (i32, i32, i32) {
    %c0_i32 = arith.constant 0 : i32
    %c0_i32_0 = arith.constant 0 : i32
    %c0_i32_1 = arith.constant 0 : i32
    %c0_i32_2 = arith.constant 0 : i32
    return %c0_i32, %c0_i32_0, %c0_i32_1 : i32, i32, i32
  }
  func.func @transform_8(%arg0: i32) -> (i32, i32, i32) {
    %c0_i32 = arith.constant 0 : i32
    %c0_i32_0 = arith.constant 0 : i32
    %c0_i32_1 = arith.constant 0 : i32
    %c0_i32_2 = arith.constant 0 : i32
    return %c0_i32, %c0_i32_0, %c0_i32_1 : i32, i32, i32
  }
  func.func @transform_9(%arg0: i32) -> (i32, i32) {
    %c0_i32 = arith.constant 0 : i32
    %c0_i32_0 = arith.constant 0 : i32
    %c0_i32_1 = arith.constant 0 : i32
    return %c0_i32, %c0_i32_0 : i32, i32
  }
  func.func @transform_10(%arg0: i32) -> (i32, i32) {
    %c0_i32 = arith.constant 0 : i32
    %c0_i32_0 = arith.constant 0 : i32
    %c0_i32_1 = arith.constant 0 : i32
    return %c0_i32, %c0_i32_0 : i32, i32
  }
  func.func @transform_11(%arg0: i32) -> (i32, i32) {
    %c0_i32 = arith.constant 0 : i32
    %c0_i32_0 = arith.constant 0 : i32
    %c0_i32_1 = arith.constant 0 : i32
    return %c0_i32, %c0_i32_0 : i32, i32
  }
  func.func @transform_12(%arg0: i32) -> (i32, i32) {
    %c0_i32 = arith.constant 0 : i32
    %c0_i32_0 = arith.constant 0 : i32
    %c0_i32_1 = arith.constant 0 : i32
    return %c0_i32, %c0_i32_0 : i32, i32
  }
  func.func @transform_13(%arg0: i32) -> (i32, i32) {
    %c0_i32 = arith.constant 0 : i32
    %c0_i32_0 = arith.constant 0 : i32
    %c0_i32_1 = arith.constant 0 : i32
    return %c0_i32, %c0_i32_0 : i32, i32
  }
  func.func @transform_14(%arg0: i32) -> (i32, i32) {
    %c0_i32 = arith.constant 0 : i32
    %c0_i32_0 = arith.constant 0 : i32
    %c0_i32_1 = arith.constant 0 : i32
    return %c0_i32, %c0_i32_0 : i32, i32
  }
  func.func @transform_15(%arg0: i32) -> (i32, i32) {
    %c0_i32 = arith.constant 0 : i32
    %c0_i32_0 = arith.constant 0 : i32
    %c0_i32_1 = arith.constant 0 : i32
    return %c0_i32, %c0_i32_0 : i32, i32
  }
  func.func @transform_16(%arg0: i32) -> (i32, i32) {
    %c0_i32 = arith.constant 0 : i32
    %c0_i32_0 = arith.constant 0 : i32
    %c0_i32_1 = arith.constant 0 : i32
    return %c0_i32, %c0_i32_0 : i32, i32
  }
  func.func @transform_17(%arg0: i32) -> (i32, i32) {
    %c0_i32 = arith.constant 0 : i32
    %c0_i32_0 = arith.constant 0 : i32
    %c0_i32_1 = arith.constant 0 : i32
    return %c0_i32, %c0_i32_0 : i32, i32
  }
  func.func @transform_18(%arg0: i32) -> (i32, i32, i32) {
    %c0_i32 = arith.constant 0 : i32
    %c0_i32_0 = arith.constant 0 : i32
    %c0_i32_1 = arith.constant 0 : i32
    return %arg0, %c0_i32, %c0_i32_0 : i32, i32, i32
  }
}

</mosaic_0001>

<llo_original>
// kernel: tpu_custom_call.1
$region0: #{tpu_custom_call.1}
  #allocation0 [shape = 'u32[]', space=smem, size = 0x4, offset = 0x4, fixed_abs, tag = 'smem constant byte address 0x4 - core index']
  #allocation1 [shape = 'u32[144,128]{1,0:T(1,128)}', space=vmem, size = 0x12000, scoped, tag = 'internal scratch']
  %s0 = inlined_call_operand.hbm [shape: f32[2,8,128], index: 0, kind: input, shape index: {}]
  %s1 = inlined_call_operand.hbm [shape: f32[2,1,8], index: 1, kind: input, shape index: {}]
  %s2 = inlined_call_operand.hbm [shape: f32[2,128,64], index: 2, kind: input, shape index: {}]
  %s3 = inlined_call_operand.hbm [shape: f32[2,1,64], index: 3, kind: input, shape index: {}]
  %s4 = inlined_call_operand.hbm [shape: f32[2,128,64], index: 4, kind: input, shape index: {}]
  %s5 = inlined_call_operand.hbm [shape: f32[2,1,64], index: 5, kind: input, shape index: {}]
  %s6 = inlined_call_operand.hbm [shape: f32[2,128,64], index: 6, kind: input, shape index: {}]
  %s7 = inlined_call_operand.hbm [shape: f32[2,1,64], index: 7, kind: input, shape index: {}]
  %s8 = inlined_call_operand.hbm [shape: f32[2,64,128], index: 8, kind: input, shape index: {}]
  %s9 = inlined_call_operand.hbm [shape: f32[1,128], index: 9, kind: input, shape index: {}]
  %s10 = inlined_call_operand.hbm [shape: f32[128,512], index: 10, kind: input, shape index: {}]
  %s11 = inlined_call_operand.hbm [shape: f32[1,512], index: 11, kind: input, shape index: {}]
  %s12 = inlined_call_operand.hbm [shape: f32[512,128], index: 12, kind: input, shape index: {}]
  %s13 = inlined_call_operand.hbm [shape: f32[1,128], index: 13, kind: input, shape index: {}]
  %s14 = inlined_call_operand.hbm [shape: f32[1,128], index: 14, kind: input, shape index: {}]
  %s15 = inlined_call_operand.hbm [shape: f32[1,128], index: 15, kind: input, shape index: {}]
  %s16 = inlined_call_operand.hbm [shape: f32[1,128], index: 16, kind: input, shape index: {}]
  %s17 = inlined_call_operand.hbm [shape: f32[1,128], index: 17, kind: input, shape index: {}]
  %s18 = inlined_call_operand.hbm [shape: f32[2,8,128], index: 18, kind: output, shape index: {}]
  %s19 = sld [smem:[#allocation0]]
  $region177: #{tpu_custom_call.1} parent=0
    _
  %s21 = ssub.s32 1, %s19
  %s22 = scalar_select 0, %s21, %s19
  $region1: #{tpu_custom_call.1} parent=0
    #allocation2 [shape = 'u8[8192]{0}', space=vmem, size = 0x2000, scoped, tag = 'input window, operand 0']
    #allocation3 [shape = 's32[2]{0}', space=sflag, size = 0x8, scoped, tag = 'scoped memory for tpu_custom_call.1']
    #allocation4 [shape = 's32[2]{0}', space=sflag, size = 0x8, scoped, tag = 'scoped memory for tpu_custom_call.1']
    #allocation5 [shape = 'u8[1024]{0}', space=vmem, size = 0x400, scoped, tag = 'input window, operand 1']
    #allocation6 [shape = 's32[2]{0}', space=sflag, size = 0x8, scoped, tag = 'scoped memory for tpu_custom_call.1']
    #allocation7 [shape = 'u8[131072]{0}', space=vmem, size = 0x20000, scoped, tag = 'input window, operand 2, single buffered']
    #allocation8 [shape = 'u8[1024]{0}', space=vmem, size = 0x400, scoped, tag = 'input window, operand 3, single buffered']
    #allocation9 [shape = 's32[1]{0}', space=sflag, size = 0x4, scoped, tag = 'scoped memory for tpu_custom_call.1']
    #allocation10 [shape = 'u8[131072]{0}', space=vmem, size = 0x20000, scoped, tag = 'input window, operand 4, single buffered']
    #allocation11 [shape = 'u8[1024]{0}', space=vmem, size = 0x400, scoped, tag = 'input window, operand 5, single buffered']
    #allocation12 [shape = 's32[1]{0}', space=sflag, size = 0x4, scoped, tag = 'scoped memory for tpu_custom_call.1']
    #allocation13 [shape = 'u8[131072]{0}', space=vmem, size = 0x20000, scoped, tag = 'input window, operand 6, single buffered']
    #allocation14 [shape = 'u8[1024]{0}', space=vmem, size = 0x400, scoped, tag = 'input window, operand 7, single buffered']
    #allocation15 [shape = 's32[1]{0}', space=sflag, size = 0x4, scoped, tag = 'scoped memory for tpu_custom_call.1']
    #allocation16 [shape = 'u8[65536]{0}', space=vmem, size = 0x10000, scoped, tag = 'input window, operand 8, single buffered']
    #allocation17 [shape = 'u8[512]{0}', space=vmem, size = 0x400, scoped, tag = 'input window, operand 9, single buffered']
    #allocation18 [shape = 's32[1]{0}', space=sflag, size = 0x4, scoped, tag = 'scoped memory for tpu_custom_call.1']
    #allocation19 [shape = 'u8[262144]{0}', space=vmem, size = 0x40000, scoped, tag = 'input window, operand 10, single buffered']
    #allocation20 [shape = 'u8[2048]{0}', space=vmem, size = 0x800, scoped, tag = 'input window, operand 11, single buffered']
    #allocation21 [shape = 's32[1]{0}', space=sflag, size = 0x4, scoped, tag = 'scoped memory for tpu_custom_call.1']
    #allocation22 [shape = 'u8[262144]{0}', space=vmem, size = 0x40000, scoped, tag = 'input window, operand 12, single buffered']
    #allocation23 [shape = 'u8[512]{0}', space=vmem, size = 0x400, scoped, tag = 'input window, operand 13, single buffered']
    #allocation24 [shape = 's32[1]{0}', space=sflag, size = 0x4, scoped, tag = 'scoped memory for tpu_custom_call.1']
    #allocation25 [shape = 'u8[512]{0}', space=vmem, size = 0x400, scoped, tag = 'input window, operand 14, single buffered']
    #allocation26 [shape = 'u8[512]{0}', space=vmem, size = 0x400, scoped, tag = 'input window, operand 15, single buffered']
    #allocation27 [shape = 's32[1]{0}', space=sflag, size = 0x4, scoped, tag = 'scoped memory for tpu_custom_call.1']
    #allocation28 [shape = 'u8[512]{0}', space=vmem, size = 0x400, scoped, tag = 'input window, operand 16, single buffered']
    #allocation29 [shape = 'u8[512]{0}', space=vmem, size = 0x400, scoped, tag = 'input window, operand 17, single buffered']
    #allocation30 [shape = 's32[1]{0}', space=sflag, size = 0x4, scoped, tag = 'scoped memory for tpu_custom_call.1']
    #allocation31 [shape = 'u8[8192]{0}', space=vmem, size = 0x2000, scoped, tag = 'output window, operand 0']
    %23 = vsyncpa [#allocation3], 0
    %s24 = scalar_lea.sflag [#allocation3], 1
    %25 = vsyncpa %s24, 0
    %26 = vsyncpa [#allocation6], 0
    %s27 = scalar_lea.sflag [#allocation6], 1
    %28 = vsyncpa %s27, 0
    %29 = vsyncpa [#allocation9], 0
    %30 = vsyncpa [#allocation12], 0
    %31 = vsyncpa [#allocation15], 0
    %32 = vsyncpa [#allocation18], 0
    %33 = vsyncpa [#allocation21], 0
    %34 = vsyncpa [#allocation24], 0
    %35 = vsyncpa [#allocation27], 0
    %36 = vsyncpa [#allocation30], 0
    %37 = vsyncpa [#allocation4], 0
    %s38 = scalar_lea.sflag [#allocation4], 1
    %39 = vsyncpa %s38, 0
    loop: start=0, step=1, limit=4
    $region2: #{tpu_custom_call.1} parent=1 // loop_pre_header
      _
    $region3: #{tpu_custom_call.1} parent=1 // loop_header
      %s41 = sphi 0, %s45
      %p42 = scmp.ge.s32.totalorder %s41, 4
      %s51 = sphi 0, %s53
      %s54 = sphi 0, %s51
      %s55 = sphi 0, %s54
      %s71 = sphi 0, %s55
      %s77 = sphi 0, %s79
      %s80 = sphi 0, %s77
      %s81 = sphi 0, %s80
      %s97 = sphi 0, %s81
      %s101 = sphi 0, %s101
      %s103 = sphi 0, %s101
      %s104 = sphi 0, %s103
      %s118 = sphi 0, %s104
      %s122 = sphi 0, %s122
      %s124 = sphi 0, %s122
      %s125 = sphi 0, %s124
      %s139 = sphi 0, %s125
      %s143 = sphi 0, %s143
      %s145 = sphi 0, %s143
      %s146 = sphi 0, %s145
      %s160 = sphi 0, %s146
      %s164 = sphi 0, %s164
      %s166 = sphi 0, %s164
      %s167 = sphi 0, %s166
      %s181 = sphi 0, %s167
      %s185 = sphi 0, %s185
      %s187 = sphi 0, %s185
      %s188 = sphi 0, %s187
      %s202 = sphi 0, %s188
      %s206 = sphi 0, %s206
      %s208 = sphi 0, %s206
      %s209 = sphi 0, %s208
      %s223 = sphi 0, %s209
      %s227 = sphi 0, %s227
      %s229 = sphi 0, %s227
      %s230 = sphi 0, %s229
      %s244 = sphi 0, %s230
      %s248 = sphi 0, %s248
      %s250 = sphi 0, %s248
      %s251 = sphi 0, %s250
      %s265 = sphi 0, %s251
      %s269 = sphi 0, %s269
      %s271 = sphi 0, %s269
      %s272 = sphi 0, %s271
      %s286 = sphi 0, %s272
      %s290 = sphi 0, %s290
      %s292 = sphi 0, %s290
      %s293 = sphi 0, %s292
      %s307 = sphi 0, %s293
      %s311 = sphi 0, %s311
      %s313 = sphi 0, %s311
      %s314 = sphi 0, %s313
      %s328 = sphi 0, %s314
      %s332 = sphi 0, %s332
      %s334 = sphi 0, %s332
      %s335 = sphi 0, %s334
      %s349 = sphi 0, %s335
      %s353 = sphi 0, %s353
      %s355 = sphi 0, %s353
      %s356 = sphi 0, %s355
      %s370 = sphi 0, %s356
      %s374 = sphi 0, %s374
      %s376 = sphi 0, %s374
      %s377 = sphi 0, %s376
      %s391 = sphi 0, %s377
      %s395 = sphi 0, %s395
      %s397 = sphi 0, %s395
      %s398 = sphi 0, %s397
      %s412 = sphi 0, %s398
      %s416 = sphi 0, %s416
      %s418 = sphi 0, %s416
      %s419 = sphi 0, %s418
      %s433 = sphi 0, %s419
      %s439 = sphi 0, %s441
      %s442 = sphi 0, %s439
      %s443 = sphi 0, %s442
      %s459 = sphi 0, %s443
    $region4: #{tpu_custom_call.1} parent=1 // loop_header_branch
      %44 = sbr.rel (%p42) target = $region8
    $region5: #{tpu_custom_call.1} parent=1 // loop_body
      %s46 = ssub.s32 %s41, 1
      %s47 = ssub.s32 %s41, 2
      %s48 = sadd.s32 %s41, 1
      %s49 = ssub.s32 %s41, %s48
      %p50 = scmp.eq.s32.totalorder %s49, 0
      %s52 = sadd.s32 %s51, 1
      %s53 = scalar_select %p50, %s51, %s52
      %p56 = pneg %p50
      %p57 = scmp.eq.s32.totalorder %s41, 1
      %p58 = por %p56, %p57
      %p59 = scmp.ne.s32.totalorder %s51, %s54
      %p60 = scmp.eq.s32.totalorder %s41, 0
      %p61 = por %p59, %p60
      %p62 = scmp.ne.s32.totalorder %s51, %s54
      %p63 = scmp.eq.s32.totalorder %s46, 1
      %p64 = por %p62, %p63
      %p65 = scmp.ne.s32.totalorder %s54, %s55
      %p66 = scmp.eq.s32.totalorder %s46, 0
      %p67 = por %p65, %p66
      %p68 = scmp.ne.s32.totalorder %s54, %s55
      %p69 = scmp.eq.s32.totalorder %s47, 1
      %p70 = por %p68, %p69
      %p72 = scmp.ne.s32.totalorder %s55, %s71
      %p73 = scmp.eq.s32.totalorder %s47, 0
      %p74 = por %p72, %p73
      %s75 = ssub.s32 %s41, %s48
      %p76 = scmp.eq.s32.totalorder %s75, 0
      %s78 = sadd.s32 %s77, 1
      %s79 = scalar_select %p76, %s77, %s78
      %p82 = pneg %p76
      %p83 = scmp.eq.s32.totalorder %s41, 1
      %p84 = por %p82, %p83
      %p85 = scmp.ne.s32.totalorder %s77, %s80
      %p86 = scmp.eq.s32.totalorder %s41, 0
      %p87 = por %p85, %p86
      %p88 = scmp.ne.s32.totalorder %s77, %s80
      %p89 = scmp.eq.s32.totalorder %s46, 1
      %p90 = por %p88, %p89
      %p91 = scmp.ne.s32.totalorder %s80, %s81
      %p92 = scmp.eq.s32.totalorder %s46, 0
      %p93 = por %p91, %p92
      %p94 = scmp.ne.s32.totalorder %s80, %s81
      %p95 = scmp.eq.s32.totalorder %s47, 1
      %p96 = por %p94, %p95
      %p98 = scmp.ne.s32.totalorder %s81, %s97
      %p99 = scmp.eq.s32.totalorder %s47, 0
      %p100 = por %p98, %p99
      %s102 = sadd.s32 %s101, 1
      %p105 = scmp.eq.s32.totalorder %s41, 1
      %p106 = scmp.ne.s32.totalorder %s101, %s103
      %p107 = scmp.eq.s32.totalorder %s41, 0
      %p108 = por %p106, %p107
      %p109 = scmp.ne.s32.totalorder %s101, %s103
      %p110 = scmp.eq.s32.totalorder %s46, 1
      %p111 = por %p109, %p110
      %p112 = scmp.ne.s32.totalorder %s103, %s104
      %p113 = scmp.eq.s32.totalorder %s46, 0
      %p114 = por %p112, %p113
      %p115 = scmp.ne.s32.totalorder %s103, %s104
      %p116 = scmp.eq.s32.totalorder %s47, 1
      %p117 = por %p115, %p116
      %p119 = scmp.ne.s32.totalorder %s104, %s118
      %p120 = scmp.eq.s32.totalorder %s47, 0
      %p121 = por %p119, %p120
      %s123 = sadd.s32 %s122, 1
      %p126 = scmp.eq.s32.totalorder %s41, 1
      %p127 = scmp.ne.s32.totalorder %s122, %s124
      %p128 = scmp.eq.s32.totalorder %s41, 0
      %p129 = por %p127, %p128
      %p130 = scmp.ne.s32.totalorder %s122, %s124
      %p131 = scmp.eq.s32.totalorder %s46, 1
      %p132 = por %p130, %p131
      %p133 = scmp.ne.s32.totalorder %s124, %s125
      %p134 = scmp.eq.s32.totalorder %s46, 0
      %p135 = por %p133, %p134
      %p136 = scmp.ne.s32.totalorder %s124, %s125
      %p137 = scmp.eq.s32.totalorder %s47, 1
      %p138 = por %p136, %p137
      %p140 = scmp.ne.s32.totalorder %s125, %s139
      %p141 = scmp.eq.s32.totalorder %s47, 0
      %p142 = por %p140, %p141
      %s144 = sadd.s32 %s143, 1
      %p147 = scmp.eq.s32.totalorder %s41, 1
      %p148 = scmp.ne.s32.totalorder %s143, %s145
      %p149 = scmp.eq.s32.totalorder %s41, 0
      %p150 = por %p148, %p149
      %p151 = scmp.ne.s32.totalorder %s143, %s145
      %p152 = scmp.eq.s32.totalorder %s46, 1
      %p153 = por %p151, %p152
      %p154 = scmp.ne.s32.totalorder %s145, %s146
      %p155 = scmp.eq.s32.totalorder %s46, 0
      %p156 = por %p154, %p155
      %p157 = scmp.ne.s32.totalorder %s145, %s146
      %p158 = scmp.eq.s32.totalorder %s47, 1
      %p159 = por %p157, %p158
      %p161 = scmp.ne.s32.totalorder %s146, %s160
      %p162 = scmp.eq.s32.totalorder %s47, 0
      %p163 = por %p161, %p162
      %s165 = sadd.s32 %s164, 1
      %p168 = scmp.eq.s32.totalorder %s41, 1
      %p169 = scmp.ne.s32.totalorder %s164, %s166
      %p170 = scmp.eq.s32.totalorder %s41, 0
      %p171 = por %p169, %p170
      %p172 = scmp.ne.s32.totalorder %s164, %s166
      %p173 = scmp.eq.s32.totalorder %s46, 1
      %p174 = por %p172, %p173
      %p175 = scmp.ne.s32.totalorder %s166, %s167
      %p176 = scmp.eq.s32.totalorder %s46, 0
      %p177 = por %p175, %p176
      %p178 = scmp.ne.s32.totalorder %s166, %s167
      %p179 = scmp.eq.s32.totalorder %s47, 1
      %p180 = por %p178, %p179
      %p182 = scmp.ne.s32.totalorder %s167, %s181
      %p183 = scmp.eq.s32.totalorder %s47, 0
      %p184 = por %p182, %p183
      %s186 = sadd.s32 %s185, 1
      %p189 = scmp.eq.s32.totalorder %s41, 1
      %p190 = scmp.ne.s32.totalorder %s185, %s187
      %p191 = scmp.eq.s32.totalorder %s41, 0
      %p192 = por %p190, %p191
      %p193 = scmp.ne.s32.totalorder %s185, %s187
      %p194 = scmp.eq.s32.totalorder %s46, 1
      %p195 = por %p193, %p194
      %p196 = scmp.ne.s32.totalorder %s187, %s188
      %p197 = scmp.eq.s32.totalorder %s46, 0
      %p198 = por %p196, %p197
      %p199 = scmp.ne.s32.totalorder %s187, %s188
      %p200 = scmp.eq.s32.totalorder %s47, 1
      %p201 = por %p199, %p200
      %p203 = scmp.ne.s32.totalorder %s188, %s202
      %p204 = scmp.eq.s32.totalorder %s47, 0
      %p205 = por %p203, %p204
      %s207 = sadd.s32 %s206, 1
      %p210 = scmp.eq.s32.totalorder %s41, 1
      %p211 = scmp.ne.s32.totalorder %s206, %s208
      %p212 = scmp.eq.s32.totalorder %s41, 0
      %p213 = por %p211, %p212
      %p214 = scmp.ne.s32.totalorder %s206, %s208
      %p215 = scmp.eq.s32.totalorder %s46, 1
      %p216 = por %p214, %p215
      %p217 = scmp.ne.s32.totalorder %s208, %s209
      %p218 = scmp.eq.s32.totalorder %s46, 0
      %p219 = por %p217, %p218
      %p220 = scmp.ne.s32.totalorder %s208, %s209
      %p221 = scmp.eq.s32.totalorder %s47, 1
      %p222 = por %p220, %p221
      %p224 = scmp.ne.s32.totalorder %s209, %s223
      %p225 = scmp.eq.s32.totalorder %s47, 0
      %p226 = por %p224, %p225
      %s228 = sadd.s32 %s227, 1
      %p231 = scmp.eq.s32.totalorder %s41, 1
      %p232 = scmp.ne.s32.totalorder %s227, %s229
      %p233 = scmp.eq.s32.totalorder %s41, 0
      %p234 = por %p232, %p233
      %p235 = scmp.ne.s32.totalorder %s227, %s229
      %p236 = scmp.eq.s32.totalorder %s46, 1
      %p237 = por %p235, %p236
      %p238 = scmp.ne.s32.totalorder %s229, %s230
      %p239 = scmp.eq.s32.totalorder %s46, 0
      %p240 = por %p238, %p239
      %p241 = scmp.ne.s32.totalorder %s229, %s230
      %p242 = scmp.eq.s32.totalorder %s47, 1
      %p243 = por %p241, %p242
      %p245 = scmp.ne.s32.totalorder %s230, %s244
      %p246 = scmp.eq.s32.totalorder %s47, 0
      %p247 = por %p245, %p246
      %s249 = sadd.s32 %s248, 1
      %p252 = scmp.eq.s32.totalorder %s41, 1
      %p253 = scmp.ne.s32.totalorder %s248, %s250
      %p254 = scmp.eq.s32.totalorder %s41, 0
      %p255 = por %p253, %p254
      %p256 = scmp.ne.s32.totalorder %s248, %s250
      %p257 = scmp.eq.s32.totalorder %s46, 1
      %p258 = por %p256, %p257
      %p259 = scmp.ne.s32.totalorder %s250, %s251
      %p260 = scmp.eq.s32.totalorder %s46, 0
      %p261 = por %p259, %p260
      %p262 = scmp.ne.s32.totalorder %s250, %s251
      %p263 = scmp.eq.s32.totalorder %s47, 1
      %p264 = por %p262, %p263
      %p266 = scmp.ne.s32.totalorder %s251, %s265
      %p267 = scmp.eq.s32.totalorder %s47, 0
      %p268 = por %p266, %p267
      %s270 = sadd.s32 %s269, 1
      %p273 = scmp.eq.s32.totalorder %s41, 1
      %p274 = scmp.ne.s32.totalorder %s269, %s271
      %p275 = scmp.eq.s32.totalorder %s41, 0
      %p276 = por %p274, %p275
      %p277 = scmp.ne.s32.totalorder %s269, %s271
      %p278 = scmp.eq.s32.totalorder %s46, 1
      %p279 = por %p277, %p278
      %p280 = scmp.ne.s32.totalorder %s271, %s272
      %p281 = scmp.eq.s32.totalorder %s46, 0
      %p282 = por %p280, %p281
      %p283 = scmp.ne.s32.totalorder %s271, %s272
      %p284 = scmp.eq.s32.totalorder %s47, 1
      %p285 = por %p283, %p284
      %p287 = scmp.ne.s32.totalorder %s272, %s286
      %p288 = scmp.eq.s32.totalorder %s47, 0
      %p289 = por %p287, %p288
      %s291 = sadd.s32 %s290, 1
      %p294 = scmp.eq.s32.totalorder %s41, 1
      %p295 = scmp.ne.s32.totalorder %s290, %s292
      %p296 = scmp.eq.s32.totalorder %s41, 0
      %p297 = por %p295, %p296
      %p298 = scmp.ne.s32.totalorder %s290, %s292
      %p299 = scmp.eq.s32.totalorder %s46, 1
      %p300 = por %p298, %p299
      %p301 = scmp.ne.s32.totalorder %s292, %s293
      %p302 = scmp.eq.s32.totalorder %s46, 0
      %p303 = por %p301, %p302
      %p304 = scmp.ne.s32.totalorder %s292, %s293
      %p305 = scmp.eq.s32.totalorder %s47, 1
      %p306 = por %p304, %p305
      %p308 = scmp.ne.s32.totalorder %s293, %s307
      %p309 = scmp.eq.s32.totalorder %s47, 0
      %p310 = por %p308, %p309
      %s312 = sadd.s32 %s311, 1
      %p315 = scmp.eq.s32.totalorder %s41, 1
      %p316 = scmp.ne.s32.totalorder %s311, %s313
      %p317 = scmp.eq.s32.totalorder %s41, 0
      %p318 = por %p316, %p317
      %p319 = scmp.ne.s32.totalorder %s311, %s313
      %p320 = scmp.eq.s32.totalorder %s46, 1
      %p321 = por %p319, %p320
      %p322 = scmp.ne.s32.totalorder %s313, %s314
      %p323 = scmp.eq.s32.totalorder %s46, 0
      %p324 = por %p322, %p323
      %p325 = scmp.ne.s32.totalorder %s313, %s314
      %p326 = scmp.eq.s32.totalorder %s47, 1
      %p327 = por %p325, %p326
      %p329 = scmp.ne.s32.totalorder %s314, %s328
      %p330 = scmp.eq.s32.totalorder %s47, 0
      %p331 = por %p329, %p330
      %s333 = sadd.s32 %s332, 1
      %p336 = scmp.eq.s32.totalorder %s41, 1
      %p337 = scmp.ne.s32.totalorder %s332, %s334
      %p338 = scmp.eq.s32.totalorder %s41, 0
      %p339 = por %p337, %p338
      %p340 = scmp.ne.s32.totalorder %s332, %s334
      %p341 = scmp.eq.s32.totalorder %s46, 1
      %p342 = por %p340, %p341
      %p343 = scmp.ne.s32.totalorder %s334, %s335
      %p344 = scmp.eq.s32.totalorder %s46, 0
      %p345 = por %p343, %p344
      %p346 = scmp.ne.s32.totalorder %s334, %s335
      %p347 = scmp.eq.s32.totalorder %s47, 1
      %p348 = por %p346, %p347
      %p350 = scmp.ne.s32.totalorder %s335, %s349
      %p351 = scmp.eq.s32.totalorder %s47, 0
      %p352 = por %p350, %p351
      %s354 = sadd.s32 %s353, 1
      %p357 = scmp.eq.s32.totalorder %s41, 1
      %p358 = scmp.ne.s32.totalorder %s353, %s355
      %p359 = scmp.eq.s32.totalorder %s41, 0
      %p360 = por %p358, %p359
      %p361 = scmp.ne.s32.totalorder %s353, %s355
      %p362 = scmp.eq.s32.totalorder %s46, 1
      %p363 = por %p361, %p362
      %p364 = scmp.ne.s32.totalorder %s355, %s356
      %p365 = scmp.eq.s32.totalorder %s46, 0
      %p366 = por %p364, %p365
      %p367 = scmp.ne.s32.totalorder %s355, %s356
      %p368 = scmp.eq.s32.totalorder %s47, 1
      %p369 = por %p367, %p368
      %p371 = scmp.ne.s32.totalorder %s356, %s370
      %p372 = scmp.eq.s32.totalorder %s47, 0
      %p373 = por %p371, %p372
      %s375 = sadd.s32 %s374, 1
      %p378 = scmp.eq.s32.totalorder %s41, 1
      %p379 = scmp.ne.s32.totalorder %s374, %s376
      %p380 = scmp.eq.s32.totalorder %s41, 0
      %p381 = por %p379, %p380
      %p382 = scmp.ne.s32.totalorder %s374, %s376
      %p383 = scmp.eq.s32.totalorder %s46, 1
      %p384 = por %p382, %p383
      %p385 = scmp.ne.s32.totalorder %s376, %s377
      %p386 = scmp.eq.s32.totalorder %s46, 0
      %p387 = por %p385, %p386
      %p388 = scmp.ne.s32.totalorder %s376, %s377
      %p389 = scmp.eq.s32.totalorder %s47, 1
      %p390 = por %p388, %p389
      %p392 = scmp.ne.s32.totalorder %s377, %s391
      %p393 = scmp.eq.s32.totalorder %s47, 0
      %p394 = por %p392, %p393
      %s396 = sadd.s32 %s395, 1
      %p399 = scmp.eq.s32.totalorder %s41, 1
      %p400 = scmp.ne.s32.totalorder %s395, %s397
      %p401 = scmp.eq.s32.totalorder %s41, 0
      %p402 = por %p400, %p401
      %p403 = scmp.ne.s32.totalorder %s395, %s397
      %p404 = scmp.eq.s32.totalorder %s46, 1
      %p405 = por %p403, %p404
      %p406 = scmp.ne.s32.totalorder %s397, %s398
      %p407 = scmp.eq.s32.totalorder %s46, 0
      %p408 = por %p406, %p407
      %p409 = scmp.ne.s32.totalorder %s397, %s398
      %p410 = scmp.eq.s32.totalorder %s47, 1
      %p411 = por %p409, %p410
      %p413 = scmp.ne.s32.totalorder %s398, %s412
      %p414 = scmp.eq.s32.totalorder %s47, 0
      %p415 = por %p413, %p414
      %s417 = sadd.s32 %s416, 1
      %p420 = scmp.eq.s32.totalorder %s41, 1
      %p421 = scmp.ne.s32.totalorder %s416, %s418
      %p422 = scmp.eq.s32.totalorder %s41, 0
      %p423 = por %p421, %p422
      %p424 = scmp.ne.s32.totalorder %s416, %s418
      %p425 = scmp.eq.s32.totalorder %s46, 1
      %p426 = por %p424, %p425
      %p427 = scmp.ne.s32.totalorder %s418, %s419
      %p428 = scmp.eq.s32.totalorder %s46, 0
      %p429 = por %p427, %p428
      %p430 = scmp.ne.s32.totalorder %s418, %s419
      %p431 = scmp.eq.s32.totalorder %s47, 1
      %p432 = por %p430, %p431
      %p434 = scmp.ne.s32.totalorder %s419, %s433
      %p435 = scmp.eq.s32.totalorder %s47, 0
      %p436 = por %p434, %p435
      %s437 = ssub.s32 %s41, %s48
      %p438 = scmp.eq.s32.totalorder %s437, 0
      %s440 = sadd.s32 %s439, 1
      %s441 = scalar_select %p438, %s439, %s440
      %p444 = pneg %p438
      %p445 = scmp.eq.s32.totalorder %s41, 1
      %p446 = por %p444, %p445
      %p447 = scmp.ne.s32.totalorder %s439, %s442
      %p448 = scmp.eq.s32.totalorder %s41, 0
      %p449 = por %p447, %p448
      %p450 = scmp.ne.s32.totalorder %s439, %s442
      %p451 = scmp.eq.s32.totalorder %s46, 1
      %p452 = por %p450, %p451
      %p453 = scmp.ne.s32.totalorder %s442, %s443
      %p454 = scmp.eq.s32.totalorder %s46, 0
      %p455 = por %p453, %p454
      %p456 = scmp.ne.s32.totalorder %s442, %s443
      %p457 = scmp.eq.s32.totalorder %s47, 1
      %p458 = por %p456, %p457
      %p460 = scmp.ne.s32.totalorder %s443, %s459
      %p461 = scmp.eq.s32.totalorder %s47, 0
      %p462 = por %p460, %p461
      %p463 = scmp.le.s32.totalorder 1, %s41
      %p464 = scmp.lt.s32.totalorder %s41, 3
      %p465 = pnand %p463, %p464
      %p466 = pneg %p465
      // Predicated region
      $region9: #{tpu_custom_call.1} parent=5 // pred_check
        _
      $region10: #{tpu_custom_call.1} parent=5 // pred_check_branch
        %468 = sbr.rel (%p465) target = $region12
      $region11: #{tpu_custom_call.1} parent=5 // pred_region
        %s469 = ssub.s32 %s41, 1
        // Predicated region
        $region13: #{tpu_custom_call.1} parent=11 // pred_check
          %p470 = pneg %p114
        $region14: #{tpu_custom_call.1} parent=11 // pred_check_branch
          %472 = sbr.rel (%p470) target = $region16
        $region15: #{tpu_custom_call.1} parent=11 // pred_region
          %s474 = ssub.s32 4096, 4096
          %475 = vsyncadd [#allocation6], %s474
          %s476 = sshll.u32 [#allocation7], 4
          %s477 = int_to_ptr.vmem [resolvable:$true] %s476
          %482 = dma.hbm_to_vmem [thread:$0]  %s2, 4096, %s477, [#allocation6], 128, 128, 8
        $region16: #{tpu_custom_call.1} parent=11 // pred_fallthru
          _
        // Predicated region
        $region17: #{tpu_custom_call.1} parent=11 // pred_check
          %p483 = pneg %p135
        $region18: #{tpu_custom_call.1} parent=11 // pred_check_branch
          %485 = sbr.rel (%p483) target = $region20
        $region19: #{tpu_custom_call.1} parent=11 // pred_region
          %s487 = ssub.s32 32, 32
          %488 = vsyncadd [#allocation9], %s487
          %s489 = sshll.u32 [#allocation8], 4
          %s490 = int_to_ptr.vmem [resolvable:$true] %s489
          %495 = dma.hbm_to_vmem [thread:$0]  %s3, 32, %s490, [#allocation9], 16, 16, 1
        $region20: #{tpu_custom_call.1} parent=11 // pred_fallthru
          _
        // Predicated region
        $region21: #{tpu_custom_call.1} parent=11 // pred_check
          %p496 = pneg %p156
        $region22: #{tpu_custom_call.1} parent=11 // pred_check_branch
          %498 = sbr.rel (%p496) target = $region24
        $region23: #{tpu_custom_call.1} parent=11 // pred_region
          %s500 = ssub.s32 4096, 4096
          %501 = vsyncadd [#allocation9], %s500
          %s502 = sshll.u32 [#allocation10], 4
          %s503 = int_to_ptr.vmem [resolvable:$true] %s502
          %508 = dma.hbm_to_vmem [thread:$0]  %s4, 4096, %s503, [#allocation9], 128, 128, 8
        $region24: #{tpu_custom_call.1} parent=11 // pred_fallthru
          _
        // Predicated region
        $region25: #{tpu_custom_call.1} parent=11 // pred_check
          %p509 = pneg %p177
        $region26: #{tpu_custom_call.1} parent=11 // pred_check_branch
          %511 = sbr.rel (%p509) target = $region28
        $region27: #{tpu_custom_call.1} parent=11 // pred_region
          %s513 = ssub.s32 32, 32
          %514 = vsyncadd [#allocation12], %s513
          %s515 = sshll.u32 [#allocation11], 4
          %s516 = int_to_ptr.vmem [resolvable:$true] %s515
          %521 = dma.hbm_to_vmem [thread:$0]  %s5, 32, %s516, [#allocation12], 16, 16, 1
        $region28: #{tpu_custom_call.1} parent=11 // pred_fallthru
          _
        // Predicated region
        $region29: #{tpu_custom_call.1} parent=11 // pred_check
          %p522 = pneg %p198
        $region30: #{tpu_custom_call.1} parent=11 // pred_check_branch
          %524 = sbr.rel (%p522) target = $region32
        $region31: #{tpu_custom_call.1} parent=11 // pred_region
          %s526 = ssub.s32 4096, 4096
          %527 = vsyncadd [#allocation12], %s526
          %s528 = sshll.u32 [#allocation13], 4
          %s529 = int_to_ptr.vmem [resolvable:$true] %s528
          %534 = dma.hbm_to_vmem [thread:$0]  %s6, 4096, %s529, [#allocation12], 128, 128, 8
        $region32: #{tpu_custom_call.1} parent=11 // pred_fallthru
          _
        // Predicated region
        $region33: #{tpu_custom_call.1} parent=11 // pred_check
          %p535 = pneg %p219
        $region34: #{tpu_custom_call.1} parent=11 // pred_check_branch
          %537 = sbr.rel (%p535) target = $region36
        $region35: #{tpu_custom_call.1} parent=11 // pred_region
          %s539 = ssub.s32 32, 32
          %540 = vsyncadd [#allocation15], %s539
          %s541 = sshll.u32 [#allocation14], 4
          %s542 = int_to_ptr.vmem [resolvable:$true] %s541
          %547 = dma.hbm_to_vmem [thread:$0]  %s7, 32, %s542, [#allocation15], 16, 16, 1
        $region36: #{tpu_custom_call.1} parent=11 // pred_fallthru
          _
        // Predicated region
        $region37: #{tpu_custom_call.1} parent=11 // pred_check
          %p548 = pneg %p240
        $region38: #{tpu_custom_call.1} parent=11 // pred_check_branch
          %550 = sbr.rel (%p548) target = $region40
        $region39: #{tpu_custom_call.1} parent=11 // pred_region
          %s552 = ssub.s32 2048, 2048
          %553 = vsyncadd [#allocation15], %s552
          %s554 = sshll.u32 [#allocation16], 4
          %s555 = int_to_ptr.vmem [resolvable:$true] %s554
          %560 = dma.hbm_to_vmem [thread:$0]  %s8, 2048, %s555, [#allocation15], 128, 128, 8
        $region40: #{tpu_custom_call.1} parent=11 // pred_fallthru
          _
        // Predicated region
        $region41: #{tpu_custom_call.1} parent=11 // pred_check
          %p561 = pneg %p261
        $region42: #{tpu_custom_call.1} parent=11 // pred_check_branch
          %563 = sbr.rel (%p561) target = $region44
        $region43: #{tpu_custom_call.1} parent=11 // pred_region
          %s565 = ssub.s32 16, 16
          %566 = vsyncadd [#allocation18], %s565
          %s568 = sshll.u32 [#allocation17], 4
          %s569 = int_to_ptr.vmem [resolvable:$true] %s568
          %571 = dma.hbm_to_vmem [thread:$0]  %s9, 16, %s569, [#allocation18]
        $region44: #{tpu_custom_call.1} parent=11 // pred_fallthru
          _
        // Predicated region
        $region45: #{tpu_custom_call.1} parent=11 // pred_check
          %p572 = pneg %p282
        $region46: #{tpu_custom_call.1} parent=11 // pred_check_branch
          %574 = sbr.rel (%p572) target = $region48
        $region47: #{tpu_custom_call.1} parent=11 // pred_region
          %s576 = ssub.s32 8192, 8192
          %577 = vsyncadd [#allocation18], %s576
          %s578 = sshll.u32 [#allocation19], 4
          %s579 = int_to_ptr.vmem [resolvable:$true] %s578
          %584 = dma.hbm_to_vmem [thread:$0]  %s10, 8192, %s579, [#allocation18], 512, 512, 32
        $region48: #{tpu_custom_call.1} parent=11 // pred_fallthru
          _
        // Predicated region
        $region49: #{tpu_custom_call.1} parent=11 // pred_check
          %p585 = pneg %p303
        $region50: #{tpu_custom_call.1} parent=11 // pred_check_branch
          %587 = sbr.rel (%p585) target = $region52
        $region51: #{tpu_custom_call.1} parent=11 // pred_region
          %s589 = ssub.s32 64, 64
          %590 = vsyncadd [#allocation21], %s589
          %s592 = sshll.u32 [#allocation20], 4
          %s593 = int_to_ptr.vmem [resolvable:$true] %s592
          %595 = dma.hbm_to_vmem [thread:$0]  %s11, 64, %s593, [#allocation21]
        $region52: #{tpu_custom_call.1} parent=11 // pred_fallthru
          _
        // Predicated region
        $region53: #{tpu_custom_call.1} parent=11 // pred_check
          %p596 = pneg %p324
        $region54: #{tpu_custom_call.1} parent=11 // pred_check_branch
          %598 = sbr.rel (%p596) target = $region56
        $region55: #{tpu_custom_call.1} parent=11 // pred_region
          %s600 = ssub.s32 8192, 8192
          %601 = vsyncadd [#allocation21], %s600
          %s602 = sshll.u32 [#allocation22], 4
          %s603 = int_to_ptr.vmem [resolvable:$true] %s602
          %608 = dma.hbm_to_vmem [thread:$0]  %s12, 8192, %s603, [#allocation21], 128, 128, 8
        $region56: #{tpu_custom_call.1} parent=11 // pred_fallthru
          _
        // Predicated region
        $region57: #{tpu_custom_call.1} parent=11 // pred_check
          %p609 = pneg %p345
        $region58: #{tpu_custom_call.1} parent=11 // pred_check_branch
          %611 = sbr.rel (%p609) target = $region60
        $region59: #{tpu_custom_call.1} parent=11 // pred_region
          %s613 = ssub.s32 16, 16
          %614 = vsyncadd [#allocation24], %s613
          %s616 = sshll.u32 [#allocation23], 4
          %s617 = int_to_ptr.vmem [resolvable:$true] %s616
          %619 = dma.hbm_to_vmem [thread:$0]  %s13, 16, %s617, [#allocation24]
        $region60: #{tpu_custom_call.1} parent=11 // pred_fallthru
          _
        // Predicated region
        $region61: #{tpu_custom_call.1} parent=11 // pred_check
          %p620 = pneg %p366
        $region62: #{tpu_custom_call.1} parent=11 // pred_check_branch
          %622 = sbr.rel (%p620) target = $region64
        $region63: #{tpu_custom_call.1} parent=11 // pred_region
          %s624 = ssub.s32 16, 16
          %625 = vsyncadd [#allocation24], %s624
          %s627 = sshll.u32 [#allocation25], 4
          %s628 = int_to_ptr.vmem [resolvable:$true] %s627
          %630 = dma.hbm_to_vmem [thread:$0]  %s14, 16, %s628, [#allocation24]
        $region64: #{tpu_custom_call.1} parent=11 // pred_fallthru
          _
        // Predicated region
        $region65: #{tpu_custom_call.1} parent=11 // pred_check
          %p631 = pneg %p387
        $region66: #{tpu_custom_call.1} parent=11 // pred_check_branch
          %633 = sbr.rel (%p631) target = $region68
        $region67: #{tpu_custom_call.1} parent=11 // pred_region
          %s635 = ssub.s32 16, 16
          %636 = vsyncadd [#allocation27], %s635
          %s638 = sshll.u32 [#allocation26], 4
          %s639 = int_to_ptr.vmem [resolvable:$true] %s638
          %641 = dma.hbm_to_vmem [thread:$0]  %s15, 16, %s639, [#allocation27]
        $region68: #{tpu_custom_call.1} parent=11 // pred_fallthru
          _
        // Predicated region
        $region69: #{tpu_custom_call.1} parent=11 // pred_check
          %p642 = pneg %p408
        $region70: #{tpu_custom_call.1} parent=11 // pred_check_branch
          %644 = sbr.rel (%p642) target = $region72
        $region71: #{tpu_custom_call.1} parent=11 // pred_region
          %s646 = ssub.s32 16, 16
          %647 = vsyncadd [#allocation27], %s646
          %s649 = sshll.u32 [#allocation28], 4
          %s650 = int_to_ptr.vmem [resolvable:$true] %s649
          %652 = dma.hbm_to_vmem [thread:$0]  %s16, 16, %s650, [#allocation27]
        $region72: #{tpu_custom_call.1} parent=11 // pred_fallthru
          _
        // Predicated region
        $region73: #{tpu_custom_call.1} parent=11 // pred_check
          %p653 = pneg %p429
        $region74: #{tpu_custom_call.1} parent=11 // pred_check_branch
          %655 = sbr.rel (%p653) target = $region76
        $region75: #{tpu_custom_call.1} parent=11 // pred_region
          %s657 = ssub.s32 16, 16
          %658 = vsyncadd [#allocation30], %s657
          %s660 = sshll.u32 [#allocation29], 4
          %s661 = int_to_ptr.vmem [resolvable:$true] %s660
          %663 = dma.hbm_to_vmem [thread:$0]  %s17, 16, %s661, [#allocation30]
        $region76: #{tpu_custom_call.1} parent=11 // pred_fallthru
          _
      $region12: #{tpu_custom_call.1} parent=5 // pred_fallthru
        _
      %p664 = scmp.lt.s32.totalorder %s41, 2
      // Predicated region
      $region77: #{tpu_custom_call.1} parent=5 // pred_check
        %p665 = pneg %p664
      $region78: #{tpu_custom_call.1} parent=5 // pred_check_branch
        %667 = sbr.rel (%p665) target = $region80
      $region79: #{tpu_custom_call.1} parent=5 // pred_region
        // Predicated region
        $region81: #{tpu_custom_call.1} parent=79 // pred_check
          %p668 = pneg %p61
        $region82: #{tpu_custom_call.1} parent=79 // pred_check_branch
          %670 = sbr.rel (%p668) target = $region84
        $region83: #{tpu_custom_call.1} parent=79 // pred_region
          %s671 = sand.u32 %s51, 1
          %s672 = scalar_lea.sflag [#allocation3], %s671
          %s673 = sand.u32 %s51, 1
          %s674 = smul.addr %s673, 8
          %s675 = scalar_lea.vmem [#allocation2], %s674
          %s677 = ssub.s32 128, 128
          %678 = vsyncadd %s672, %s677
          %s679 = smul.addr %s41, 128
          %s680 = scalar_lea.hbm %s0, %s679
          %s682 = sshll.u32 %s675, 4
          %s683 = int_to_ptr.vmem [resolvable:$true] %s682
          %685 = dma.hbm_to_vmem [thread:$0]  %s680, 128, %s683, %s672
        $region84: #{tpu_custom_call.1} parent=79 // pred_fallthru
          _
        // Predicated region
        $region85: #{tpu_custom_call.1} parent=79 // pred_check
          %p686 = pneg %p87
        $region86: #{tpu_custom_call.1} parent=79 // pred_check_branch
          %688 = sbr.rel (%p686) target = $region88
        $region87: #{tpu_custom_call.1} parent=79 // pred_region
          %s689 = sand.u32 %s41, 1
          %s690 = scalar_lea.sflag [#allocation6], %s689
          %s691 = sand.u32 %s77, 1
          %s692 = scalar_lea.vmem [#allocation5], %s691
          %s694 = ssub.s32 16, 16
          %695 = vsyncadd %s690, %s694
          %s696 = smul.addr %s41, 16
          %s697 = scalar_lea.hbm %s1, %s696
          %s699 = sshll.u32 %s692, 4
          %s700 = int_to_ptr.vmem [resolvable:$true] %s699
          %702 = dma.hbm_to_vmem [thread:$0]  %s697, 16, %s700, %s690
        $region88: #{tpu_custom_call.1} parent=79 // pred_fallthru
          _
      $region80: #{tpu_custom_call.1} parent=5 // pred_fallthru
        _
      %p703 = scmp.le.s32.totalorder 1, %s41
      %p704 = scmp.lt.s32.totalorder %s41, 3
      %p705 = pnand %p703, %p704
      %p706 = pneg %p705
      // Predicated region
      $region89: #{tpu_custom_call.1} parent=5 // pred_check
        _
      $region90: #{tpu_custom_call.1} parent=5 // pred_check_branch
        %708 = sbr.rel (%p705) target = $region92
      $region91: #{tpu_custom_call.1} parent=5 // pred_region
        %s709 = ssub.s32 %s41, 1
        %s710 = sand.u32 %s54, 1
        %s711 = scalar_lea.sflag [#allocation3], %s710
        %s712 = sand.u32 %s54, 1
        %s713 = smul.addr %s712, 8
        %s714 = scalar_lea.vmem [#allocation2], %s713
        // Predicated region
        $region93: #{tpu_custom_call.1} parent=91 // pred_check
          %p715 = pneg %p67
        $region94: #{tpu_custom_call.1} parent=91 // pred_check_branch
          %717 = sbr.rel (%p715) target = $region96
        $region95: #{tpu_custom_call.1} parent=91 // pred_region
          %718 = dma.done %s711, 128
        $region96: #{tpu_custom_call.1} parent=91 // pred_fallthru
          _
        %s719 = sand.u32 %s46, 1
        %s720 = scalar_lea.sflag [#allocation6], %s719
        %s721 = sand.u32 %s80, 1
        %s722 = scalar_lea.vmem [#allocation5], %s721
        // Predicated region
        $region97: #{tpu_custom_call.1} parent=91 // pred_check
          %p723 = pneg %p93
        $region98: #{tpu_custom_call.1} parent=91 // pred_check_branch
          %725 = sbr.rel (%p723) target = $region100
        $region99: #{tpu_custom_call.1} parent=91 // pred_region
          %726 = dma.done %s720, 16
        $region100: #{tpu_custom_call.1} parent=91 // pred_fallthru
          _
        // Predicated region
        $region101: #{tpu_custom_call.1} parent=91 // pred_check
          %p727 = pneg %p114
        $region102: #{tpu_custom_call.1} parent=91 // pred_check_branch
          %729 = sbr.rel (%p727) target = $region104
        $region103: #{tpu_custom_call.1} parent=91 // pred_region
          %730 = dma.done [#allocation6], 4096
        $region104: #{tpu_custom_call.1} parent=91 // pred_fallthru
          _
        // Predicated region
        $region105: #{tpu_custom_call.1} parent=91 // pred_check
          %p731 = pneg %p135
        $region106: #{tpu_custom_call.1} parent=91 // pred_check_branch
          %733 = sbr.rel (%p731) target = $region108
        $region107: #{tpu_custom_call.1} parent=91 // pred_region
          %734 = dma.done [#allocation9], 32
        $region108: #{tpu_custom_call.1} parent=91 // pred_fallthru
          _
        // Predicated region
        $region109: #{tpu_custom_call.1} parent=91 // pred_check
          %p735 = pneg %p156
        $region110: #{tpu_custom_call.1} parent=91 // pred_check_branch
          %737 = sbr.rel (%p735) target = $region112
        $region111: #{tpu_custom_call.1} parent=91 // pred_region
          %738 = dma.done [#allocation9], 4096
        $region112: #{tpu_custom_call.1} parent=91 // pred_fallthru
          _
        // Predicated region
        $region113: #{tpu_custom_call.1} parent=91 // pred_check
          %p739 = pneg %p177
        $region114: #{tpu_custom_call.1} parent=91 // pred_check_branch
          %741 = sbr.rel (%p739) target = $region116
        $region115: #{tpu_custom_call.1} parent=91 // pred_region
          %742 = dma.done [#allocation12], 32
        $region116: #{tpu_custom_call.1} parent=91 // pred_fallthru
          _
        // Predicated region
        $region117: #{tpu_custom_call.1} parent=91 // pred_check
          %p743 = pneg %p198
        $region118: #{tpu_custom_call.1} parent=91 // pred_check_branch
          %745 = sbr.rel (%p743) target = $region120
        $region119: #{tpu_custom_call.1} parent=91 // pred_region
          %746 = dma.done [#allocation12], 4096
        $region120: #{tpu_custom_call.1} parent=91 // pred_fallthru
          _
        // Predicated region
        $region121: #{tpu_custom_call.1} parent=91 // pred_check
          %p747 = pneg %p219
        $region122: #{tpu_custom_call.1} parent=91 // pred_check_branch
          %749 = sbr.rel (%p747) target = $region124
        $region123: #{tpu_custom_call.1} parent=91 // pred_region
          %750 = dma.done [#allocation15], 32
        $region124: #{tpu_custom_call.1} parent=91 // pred_fallthru
          _
        // Predicated region
        $region125: #{tpu_custom_call.1} parent=91 // pred_check
          %p751 = pneg %p240
        $region126: #{tpu_custom_call.1} parent=91 // pred_check_branch
          %753 = sbr.rel (%p751) target = $region128
        $region127: #{tpu_custom_call.1} parent=91 // pred_region
          %754 = dma.done [#allocation15], 2048
        $region128: #{tpu_custom_call.1} parent=91 // pred_fallthru
          _
        // Predicated region
        $region129: #{tpu_custom_call.1} parent=91 // pred_check
          %p755 = pneg %p261
        $region130: #{tpu_custom_call.1} parent=91 // pred_check_branch
          %757 = sbr.rel (%p755) target = $region132
        $region131: #{tpu_custom_call.1} parent=91 // pred_region
          %758 = dma.done [#allocation18], 16
        $region132: #{tpu_custom_call.1} parent=91 // pred_fallthru
          _
        // Predicated region
        $region133: #{tpu_custom_call.1} parent=91 // pred_check
          %p759 = pneg %p282
        $region134: #{tpu_custom_call.1} parent=91 // pred_check_branch
          %761 = sbr.rel (%p759) target = $region136
        $region135: #{tpu_custom_call.1} parent=91 // pred_region
          %762 = dma.done [#allocation18], 8192
        $region136: #{tpu_custom_call.1} parent=91 // pred_fallthru
          _
        // Predicated region
        $region137: #{tpu_custom_call.1} parent=91 // pred_check
          %p763 = pneg %p303
        $region138: #{tpu_custom_call.1} parent=91 // pred_check_branch
          %765 = sbr.rel (%p763) target = $region140
        $region139: #{tpu_custom_call.1} parent=91 // pred_region
          %766 = dma.done [#allocation21], 64
        $region140: #{tpu_custom_call.1} parent=91 // pred_fallthru
          _
        // Predicated region
        $region141: #{tpu_custom_call.1} parent=91 // pred_check
          %p767 = pneg %p324
        $region142: #{tpu_custom_call.1} parent=91 // pred_check_branch
          %769 = sbr.rel (%p767) target = $region144
        $region143: #{tpu_custom_call.1} parent=91 // pred_region
          %770 = dma.done [#allocation21], 8192
        $region144: #{tpu_custom_call.1} parent=91 // pred_fallthru
          _
        // Predicated region
        $region145: #{tpu_custom_call.1} parent=91 // pred_check
          %p771 = pneg %p345
        $region146: #{tpu_custom_call.1} parent=91 // pred_check_branch
          %773 = sbr.rel (%p771) target = $region148
        $region147: #{tpu_custom_call.1} parent=91 // pred_region
          %774 = dma.done [#allocation24], 16
        $region148: #{tpu_custom_call.1} parent=91 // pred_fallthru
          _
        // Predicated region
        $region149: #{tpu_custom_call.1} parent=91 // pred_check
          %p775 = pneg %p366
        $region150: #{tpu_custom_call.1} parent=91 // pred_check_branch
          %777 = sbr.rel (%p775) target = $region152
        $region151: #{tpu_custom_call.1} parent=91 // pred_region
          %778 = dma.done [#allocation24], 16
        $region152: #{tpu_custom_call.1} parent=91 // pred_fallthru
          _
        // Predicated region
        $region153: #{tpu_custom_call.1} parent=91 // pred_check
          %p779 = pneg %p387
        $region154: #{tpu_custom_call.1} parent=91 // pred_check_branch
          %781 = sbr.rel (%p779) target = $region156
        $region155: #{tpu_custom_call.1} parent=91 // pred_region
          %782 = dma.done [#allocation27], 16
        $region156: #{tpu_custom_call.1} parent=91 // pred_fallthru
          _
        // Predicated region
        $region157: #{tpu_custom_call.1} parent=91 // pred_check
          %p783 = pneg %p408
        $region158: #{tpu_custom_call.1} parent=91 // pred_check_branch
          %785 = sbr.rel (%p783) target = $region160
        $region159: #{tpu_custom_call.1} parent=91 // pred_region
          %786 = dma.done [#allocation27], 16
        $region160: #{tpu_custom_call.1} parent=91 // pred_fallthru
          _
        // Predicated region
        $region161: #{tpu_custom_call.1} parent=91 // pred_check
          %p787 = pneg %p429
        $region162: #{tpu_custom_call.1} parent=91 // pred_check_branch
          %789 = sbr.rel (%p787) target = $region164
        $region163: #{tpu_custom_call.1} parent=91 // pred_region
          %790 = dma.done [#allocation30], 16
        $region164: #{tpu_custom_call.1} parent=91 // pred_fallthru
          _
        %s791 = sand.u32 %s54, 1
        %s792 = scalar_lea.sflag [#allocation3], %s791
        %s793 = sand.u32 %s54, 1
        %s794 = smul.addr %s793, 8
        %s795 = scalar_lea.vmem [#allocation2], %s794
        %p796 = pneg %p67
        %p797 = pneg %p64
        %s798 = sand.u32 %s46, 1
        %s799 = scalar_lea.sflag [#allocation6], %s798
        %s800 = sand.u32 %s80, 1
        %s801 = scalar_lea.vmem [#allocation5], %s800
        %p802 = pneg %p93
        %p803 = pneg %p90
        %p804 = pneg %p114
        %p805 = pneg %p111
        %p806 = pneg %p135
        %p807 = pneg %p132
        %p808 = pneg %p156
        %p809 = pneg %p153
        %p810 = pneg %p177
        %p811 = pneg %p174
        %p812 = pneg %p198
        %p813 = pneg %p195
        %p814 = pneg %p219
        %p815 = pneg %p216
        %p816 = pneg %p240
        %p817 = pneg %p237
        %p818 = pneg %p261
        %p819 = pneg %p258
        %p820 = pneg %p282
        %p821 = pneg %p279
        %p822 = pneg %p303
        %p823 = pneg %p300
        %p824 = pneg %p324
        %p825 = pneg %p321
        %p826 = pneg %p345
        %p827 = pneg %p342
        %p828 = pneg %p366
        %p829 = pneg %p363
        %p830 = pneg %p387
        %p831 = pneg %p384
        %p832 = pneg %p408
        %p833 = pneg %p405
        %p834 = pneg %p429
        %p835 = pneg %p426
        %p836 = pneg %p455
        %p837 = pneg %p452
        %s838 = sand.u32 %s442, 1
        %s839 = scalar_lea.sflag [#allocation4], %s838
        %s840 = sand.u32 %s442, 1
        %s841 = smul.addr %s840, 8
        %s842 = scalar_lea.vmem [#allocation31], %s841
        %v843 = vld [vmem:[%s714] sm:$0xff]
        %v844 = vld [vmem:[#allocation7] sm:$0xff]
        %v845 = vld [vmem:[#allocation7 + $0x8] sm:$0xff]
        %v846 = vld [vmem:[#allocation7 + $0x10] sm:$0xff]
        %v847 = vld [vmem:[#allocation7 + $0x18] sm:$0xff]
        %v848 = vld [vmem:[#allocation7 + $0x20] sm:$0xff]
        %v849 = vld [vmem:[#allocation7 + $0x28] sm:$0xff]
        %v850 = vld [vmem:[#allocation7 + $0x30] sm:$0xff]
        %v851 = vld [vmem:[#allocation7 + $0x38] sm:$0xff]
        %v852 = vld [vmem:[#allocation7 + $0x40] sm:$0xff]
        %v853 = vld [vmem:[#allocation7 + $0x48] sm:$0xff]
        %v854 = vld [vmem:[#allocation7 + $0x50] sm:$0xff]
        %v855 = vld [vmem:[#allocation7 + $0x58] sm:$0xff]
        %v856 = vld [vmem:[#allocation7 + $0x60] sm:$0xff]
        %v857 = vld [vmem:[#allocation7 + $0x68] sm:$0xff]
        %v858 = vld [vmem:[#allocation7 + $0x70] sm:$0xff]
        %v859 = vld [vmem:[#allocation7 + $0x78] sm:$0xff]
        %v860 = vld [vmem:[#allocation7 + $0x80] sm:$0xff]
        %v861 = vld [vmem:[#allocation7 + $0x88] sm:$0xff]
        %v862 = vld [vmem:[#allocation7 + $0x90] sm:$0xff]
        %v863 = vld [vmem:[#allocation7 + $0x98] sm:$0xff]
        %v864 = vld [vmem:[#allocation7 + $0xa0] sm:$0xff]
        %v865 = vld [vmem:[#allocation7 + $0xa8] sm:$0xff]
        %v866 = vld [vmem:[#allocation7 + $0xb0] sm:$0xff]
        %v867 = vld [vmem:[#allocation7 + $0xb8] sm:$0xff]
        %v868 = vld [vmem:[#allocation7 + $0xc0] sm:$0xff]
        %v869 = vld [vmem:[#allocation7 + $0xc8] sm:$0xff]
        %v870 = vld [vmem:[#allocation7 + $0xd0] sm:$0xff]
        %v871 = vld [vmem:[#allocation7 + $0xd8] sm:$0xff]
        %v872 = vld [vmem:[#allocation7 + $0xe0] sm:$0xff]
        %v873 = vld [vmem:[#allocation7 + $0xe8] sm:$0xff]
        %v874 = vld [vmem:[#allocation7 + $0xf0] sm:$0xff]
        %v875 = vld [vmem:[#allocation7 + $0xf8] sm:$0xff]
        %v876 = vld [vmem:[#allocation8] sm:$0x1]
        %v877 = vld [vmem:[#allocation8 + $0x1] sm:$0x1]
        %v880 = vlaneseq
        %v881 = vshrl.u32 %v880, 7
        %v882 = vsub.s32 0, %v881
        %v883 = vrot.slane %v876, %v882
        %v884 = vlaneseq
        %v885 = vshrl.u32 %v884, 7
        %v886 = vsub.s32 0, %v885
        %v887 = vrot.slane %v877, %v886
        %890 = vmatprep.subr.mxu0 0.0
        %891 = vmatpush1.msra.mxu0 %v844
        %892 = vmatprep.subr.mxu0 0.0
        %893 = vmatpush1.msra.mxu0 %v845
        %894 = vmatprep.subr.mxu0 0.0
        %895 = vmatpush1.msra.mxu0 %v846
        %896 = vmatprep.subr.mxu0 0.0
        %897 = vmatpush1.msra.mxu0 %v847
        %898 = vmatprep.subr.mxu0 0.0
        %899 = vmatpush1.msra.mxu0 %v848
        %900 = vmatprep.subr.mxu0 0.0
        %901 = vmatpush1.msra.mxu0 %v849
        %902 = vmatprep.subr.mxu0 0.0
        %903 = vmatpush1.msra.mxu0 %v850
        %904 = vmatprep.subr.mxu0 0.0
        %905 = vmatpush1.msra.mxu0 %v851
        %906 = vmatprep.subr.mxu0 0.0
        %907 = vmatpush1.msra.mxu0 %v852
        %908 = vmatprep.subr.mxu0 0.0
        %909 = vmatpush1.msra.mxu0 %v853
        %910 = vmatprep.subr.mxu0 0.0
        %911 = vmatpush1.msra.mxu0 %v854
        %912 = vmatprep.subr.mxu0 0.0
        %913 = vmatpush1.msra.mxu0 %v855
        %914 = vmatprep.subr.mxu0 0.0
        %915 = vmatpush1.msra.mxu0 %v856
        %916 = vmatprep.subr.mxu0 0.0
        %917 = vmatpush1.msra.mxu0 %v857
        %918 = vmatprep.subr.mxu0 0.0
        %919 = vmatpush1.msra.mxu0 %v858
        %920 = vmatprep.subr.mxu0 0.0
        %921 = vmatpush1.msra.mxu0 %v859
        %922 = vmatprep.subr.mxu0 0.0
        %923 = vmatpush1.msra.mxu0 0.0
        %924 = vmatprep.subr.mxu0 0.0
        %925 = vmatpush1.msra.mxu0 0.0
        %926 = vmatprep.subr.mxu0 0.0
        %927 = vmatpush1.msra.mxu0 0.0
        %928 = vmatprep.subr.mxu0 0.0
        %929 = vmatpush1.msra.mxu0 0.0
        %930 = vmatprep.subr.mxu0 0.0
        %931 = vmatpush1.msra.mxu0 0.0
        %932 = vmatprep.subr.mxu0 0.0
        %933 = vmatpush1.msra.mxu0 0.0
        %934 = vmatprep.subr.mxu0 0.0
        %935 = vmatpush1.msra.mxu0 0.0
        %936 = vmatprep.subr.mxu0 0.0
        %937 = vmatpush1.msra.mxu0 0.0
        %938 = vmatprep.subr.mxu0 0.0
        %939 = vmatpush1.msra.mxu0 0.0
        %940 = vmatprep.subr.mxu0 0.0
        %941 = vmatpush1.msra.mxu0 0.0
        %942 = vmatprep.subr.mxu0 0.0
        %943 = vmatpush1.msra.mxu0 0.0
        %944 = vmatprep.subr.mxu0 0.0
        %945 = vmatpush1.msra.mxu0 0.0
        %946 = vmatprep.subr.mxu0 0.0
        %947 = vmatpush1.msra.mxu0 0.0
        %948 = vmatprep.subr.mxu0 0.0
        %949 = vmatpush1.msra.mxu0 0.0
        %950 = vmatprep.subr.mxu0 0.0
        %951 = vmatpush1.msra.mxu0 0.0
        %952 = vmatprep.subr.mxu0 0.0
        %953 = vmatpush1.msra.mxu0 0.0
        %954 = vmatprep.mubr.f32.mxu0 0.0
        %955 = vmatmul.mubr.f32.gmra.mrb[0].mxu0 %v843
        %v956 = vpop.f32.mrb[0].mxu0
        %v957 = vadd.f32 %v883, %v956
        %v958 = vpop.f32.mrb[0].mxu0
        %959 = vdwg.mxu0
        %960 = vmatprep.subr.mxu0 0.0
        %961 = vmatpush1.msra.mxu0 %v860
        %962 = vmatprep.subr.mxu0 0.0
        %963 = vmatpush1.msra.mxu0 %v861
        %964 = vmatprep.subr.mxu0 0.0
        %965 = vmatpush1.msra.mxu0 %v862
        %966 = vmatprep.subr.mxu0 0.0
        %967 = vmatpush1.msra.mxu0 %v863
        %968 = vmatprep.subr.mxu0 0.0
        %969 = vmatpush1.msra.mxu0 %v864
        %970 = vmatprep.subr.mxu0 0.0
        %971 = vmatpush1.msra.mxu0 %v865
        %972 = vmatprep.subr.mxu0 0.0
        %973 = vmatpush1.msra.mxu0 %v866
        %974 = vmatprep.subr.mxu0 0.0
        %975 = vmatpush1.msra.mxu0 %v867
        %976 = vmatprep.subr.mxu0 0.0
        %977 = vmatpush1.msra.mxu0 %v868
        %978 = vmatprep.subr.mxu0 0.0
        %979 = vmatpush1.msra.mxu0 %v869
        %980 = vmatprep.subr.mxu0 0.0
        %981 = vmatpush1.msra.mxu0 %v870
        %982 = vmatprep.subr.mxu0 0.0
        %983 = vmatpush1.msra.mxu0 %v871
        %984 = vmatprep.subr.mxu0 0.0
        %985 = vmatpush1.msra.mxu0 %v872
        %986 = vmatprep.subr.mxu0 0.0
        %987 = vmatpush1.msra.mxu0 %v873
        %988 = vmatprep.subr.mxu0 0.0
        %989 = vmatpush1.msra.mxu0 %v874
        %990 = vmatprep.subr.mxu0 0.0
        %991 = vmatpush1.msra.mxu0 %v875
        %992 = vmatprep.subr.mxu0 0.0
        %993 = vmatpush1.msra.mxu0 0.0
        %994 = vmatprep.subr.mxu0 0.0
        %995 = vmatpush1.msra.mxu0 0.0
        %996 = vmatprep.subr.mxu0 0.0
        %997 = vmatpush1.msra.mxu0 0.0
        %998 = vmatprep.subr.mxu0 0.0
        %999 = vmatpush1.msra.mxu0 0.0
        %1000 = vmatprep.subr.mxu0 0.0
        %1001 = vmatpush1.msra.mxu0 0.0
        %1002 = vmatprep.subr.mxu0 0.0
        %1003 = vmatpush1.msra.mxu0 0.0
        %1004 = vmatprep.subr.mxu0 0.0
        %1005 = vmatpush1.msra.mxu0 0.0
        %1006 = vmatprep.subr.mxu0 0.0
        %1007 = vmatpush1.msra.mxu0 0.0
        %1008 = vmatprep.subr.mxu0 0.0
        %1009 = vmatpush1.msra.mxu0 0.0
        %1010 = vmatprep.subr.mxu0 0.0
        %1011 = vmatpush1.msra.mxu0 0.0
        %1012 = vmatprep.subr.mxu0 0.0
        %1013 = vmatpush1.msra.mxu0 0.0
        %1014 = vmatprep.subr.mxu0 0.0
        %1015 = vmatpush1.msra.mxu0 0.0
        %1016 = vmatprep.subr.mxu0 0.0
        %1017 = vmatpush1.msra.mxu0 0.0
        %1018 = vmatprep.subr.mxu0 0.0
        %1019 = vmatpush1.msra.mxu0 0.0
        %1020 = vmatprep.subr.mxu0 0.0
        %1021 = vmatpush1.msra.mxu0 0.0
        %1022 = vmatprep.subr.mxu0 0.0
        %1023 = vmatpush1.msra.mxu0 0.0
        %1024 = vmatprep.mubr.f32.mxu0 0.0
        %1025 = vmatmul.mubr.f32.gmra.mrb[0].mxu0 %v843
        %v1026 = vpop.f32.mrb[0].mxu0
        %v1027 = vadd.f32 %v887, %v1026
        %v1028 = vpop.f32.mrb[0].mxu0
        %1029 = vdwg.mxu0
        %v1030 = vld [vmem:[#allocation10] sm:$0xff]
        %v1031 = vld [vmem:[#allocation10 + $0x8] sm:$0xff]
        %v1032 = vld [vmem:[#allocation10 + $0x10] sm:$0xff]
        %v1033 = vld [vmem:[#allocation10 + $0x18] sm:$0xff]
        %v1034 = vld [vmem:[#allocation10 + $0x20] sm:$0xff]
        %v1035 = vld [vmem:[#allocation10 + $0x28] sm:$0xff]
        %v1036 = vld [vmem:[#allocation10 + $0x30] sm:$0xff]
        %v1037 = vld [vmem:[#allocation10 + $0x38] sm:$0xff]
        %v1038 = vld [vmem:[#allocation10 + $0x40] sm:$0xff]
        %v1039 = vld [vmem:[#allocation10 + $0x48] sm:$0xff]
        %v1040 = vld [vmem:[#allocation10 + $0x50] sm:$0xff]
        %v1041 = vld [vmem:[#allocation10 + $0x58] sm:$0xff]
        %v1042 = vld [vmem:[#allocation10 + $0x60] sm:$0xff]
        %v1043 = vld [vmem:[#allocation10 + $0x68] sm:$0xff]
        %v1044 = vld [vmem:[#allocation10 + $0x70] sm:$0xff]
        %v1045 = vld [vmem:[#allocation10 + $0x78] sm:$0xff]
        %v1046 = vld [vmem:[#allocation10 + $0x80] sm:$0xff]
        %v1047 = vld [vmem:[#allocation10 + $0x88] sm:$0xff]
        %v1048 = vld [vmem:[#allocation10 + $0x90] sm:$0xff]
        %v1049 = vld [vmem:[#allocation10 + $0x98] sm:$0xff]
        %v1050 = vld [vmem:[#allocation10 + $0xa0] sm:$0xff]
        %v1051 = vld [vmem:[#allocation10 + $0xa8] sm:$0xff]
        %v1052 = vld [vmem:[#allocation10 + $0xb0] sm:$0xff]
        %v1053 = vld [vmem:[#allocation10 + $0xb8] sm:$0xff]
        %v1054 = vld [vmem:[#allocation10 + $0xc0] sm:$0xff]
        %v1055 = vld [vmem:[#allocation10 + $0xc8] sm:$0xff]
        %v1056 = vld [vmem:[#allocation10 + $0xd0] sm:$0xff]
        %v1057 = vld [vmem:[#allocation10 + $0xd8] sm:$0xff]
        %v1058 = vld [vmem:[#allocation10 + $0xe0] sm:$0xff]
        %v1059 = vld [vmem:[#allocation10 + $0xe8] sm:$0xff]
        %v1060 = vld [vmem:[#allocation10 + $0xf0] sm:$0xff]
        %v1061 = vld [vmem:[#allocation10 + $0xf8] sm:$0xff]
        %v1062 = vld [vmem:[#allocation11] sm:$0x1]
        %v1063 = vld [vmem:[#allocation11 + $0x1] sm:$0x1]
        %v1066 = vlaneseq
        %v1067 = vshrl.u32 %v1066, 7
        %v1068 = vsub.s32 0, %v1067
        %v1069 = vrot.slane %v1062, %v1068
        %v1070 = vlaneseq
        %v1071 = vshrl.u32 %v1070, 7
        %v1072 = vsub.s32 0, %v1071
        %v1073 = vrot.slane %v1063, %v1072
        %1076 = vmatprep.subr.mxu0 0.0
        %1077 = vmatpush1.msra.mxu0 %v1030
        %1078 = vmatprep.subr.mxu0 0.0
        %1079 = vmatpush1.msra.mxu0 %v1031
        %1080 = vmatprep.subr.mxu0 0.0
        %1081 = vmatpush1.msra.mxu0 %v1032
        %1082 = vmatprep.subr.mxu0 0.0
        %1083 = vmatpush1.msra.mxu0 %v1033
        %1084 = vmatprep.subr.mxu0 0.0
        %1085 = vmatpush1.msra.mxu0 %v1034
        %1086 = vmatprep.subr.mxu0 0.0
        %1087 = vmatpush1.msra.mxu0 %v1035
        %1088 = vmatprep.subr.mxu0 0.0
        %1089 = vmatpush1.msra.mxu0 %v1036
        %1090 = vmatprep.subr.mxu0 0.0
        %1091 = vmatpush1.msra.mxu0 %v1037
        %1092 = vmatprep.subr.mxu0 0.0
        %1093 = vmatpush1.msra.mxu0 %v1038
        %1094 = vmatprep.subr.mxu0 0.0
        %1095 = vmatpush1.msra.mxu0 %v1039
        %1096 = vmatprep.subr.mxu0 0.0
        %1097 = vmatpush1.msra.mxu0 %v1040
        %1098 = vmatprep.subr.mxu0 0.0
        %1099 = vmatpush1.msra.mxu0 %v1041
        %1100 = vmatprep.subr.mxu0 0.0
        %1101 = vmatpush1.msra.mxu0 %v1042
        %1102 = vmatprep.subr.mxu0 0.0
        %1103 = vmatpush1.msra.mxu0 %v1043
        %1104 = vmatprep.subr.mxu0 0.0
        %1105 = vmatpush1.msra.mxu0 %v1044
        %1106 = vmatprep.subr.mxu0 0.0
        %1107 = vmatpush1.msra.mxu0 %v1045
        %1108 = vmatprep.subr.mxu0 0.0
        %1109 = vmatpush1.msra.mxu0 0.0
        %1110 = vmatprep.subr.mxu0 0.0
        %1111 = vmatpush1.msra.mxu0 0.0
        %1112 = vmatprep.subr.mxu0 0.0
        %1113 = vmatpush1.msra.mxu0 0.0
        %1114 = vmatprep.subr.mxu0 0.0
        %1115 = vmatpush1.msra.mxu0 0.0
        %1116 = vmatprep.subr.mxu0 0.0
        %1117 = vmatpush1.msra.mxu0 0.0
        %1118 = vmatprep.subr.mxu0 0.0
        %1119 = vmatpush1.msra.mxu0 0.0
        %1120 = vmatprep.subr.mxu0 0.0
        %1121 = vmatpush1.msra.mxu0 0.0
        %1122 = vmatprep.subr.mxu0 0.0
        %1123 = vmatpush1.msra.mxu0 0.0
        %1124 = vmatprep.subr.mxu0 0.0
        %1125 = vmatpush1.msra.mxu0 0.0
        %1126 = vmatprep.subr.mxu0 0.0
        %1127 = vmatpush1.msra.mxu0 0.0
        %1128 = vmatprep.subr.mxu0 0.0
        %1129 = vmatpush1.msra.mxu0 0.0
        %1130 = vmatprep.subr.mxu0 0.0
        %1131 = vmatpush1.msra.mxu0 0.0
        %1132 = vmatprep.subr.mxu0 0.0
        %1133 = vmatpush1.msra.mxu0 0.0
        %1134 = vmatprep.subr.mxu0 0.0
        %1135 = vmatpush1.msra.mxu0 0.0
        %1136 = vmatprep.subr.mxu0 0.0
        %1137 = vmatpush1.msra.mxu0 0.0
        %1138 = vmatprep.subr.mxu0 0.0
        %1139 = vmatpush1.msra.mxu0 0.0
        %1140 = vmatprep.mubr.f32.mxu0 0.0
        %1141 = vmatmul.mubr.f32.gmra.mrb[0].mxu0 %v843
        %v1142 = vpop.f32.mrb[0].mxu0
        %v1143 = vadd.f32 %v1069, %v1142
        %v1144 = vpop.f32.mrb[0].mxu0
        %1145 = vdwg.mxu0
        %1146 = vmatprep.subr.mxu0 0.0
        %1147 = vmatpush1.msra.mxu0 %v1046
        %1148 = vmatprep.subr.mxu0 0.0
        %1149 = vmatpush1.msra.mxu0 %v1047
        %1150 = vmatprep.subr.mxu0 0.0
        %1151 = vmatpush1.msra.mxu0 %v1048
        %1152 = vmatprep.subr.mxu0 0.0
        %1153 = vmatpush1.msra.mxu0 %v1049
        %1154 = vmatprep.subr.mxu0 0.0
        %1155 = vmatpush1.msra.mxu0 %v1050
        %1156 = vmatprep.subr.mxu0 0.0
        %1157 = vmatpush1.msra.mxu0 %v1051
        %1158 = vmatprep.subr.mxu0 0.0
        %1159 = vmatpush1.msra.mxu0 %v1052
        %1160 = vmatprep.subr.mxu0 0.0
        %1161 = vmatpush1.msra.mxu0 %v1053
        %1162 = vmatprep.subr.mxu0 0.0
        %1163 = vmatpush1.msra.mxu0 %v1054
        %1164 = vmatprep.subr.mxu0 0.0
        %1165 = vmatpush1.msra.mxu0 %v1055
        %1166 = vmatprep.subr.mxu0 0.0
        %1167 = vmatpush1.msra.mxu0 %v1056
        %1168 = vmatprep.subr.mxu0 0.0
        %1169 = vmatpush1.msra.mxu0 %v1057
        %1170 = vmatprep.subr.mxu0 0.0
        %1171 = vmatpush1.msra.mxu0 %v1058
        %1172 = vmatprep.subr.mxu0 0.0
        %1173 = vmatpush1.msra.mxu0 %v1059
        %1174 = vmatprep.subr.mxu0 0.0
        %1175 = vmatpush1.msra.mxu0 %v1060
        %1176 = vmatprep.subr.mxu0 0.0
        %1177 = vmatpush1.msra.mxu0 %v1061
        %1178 = vmatprep.subr.mxu0 0.0
        %1179 = vmatpush1.msra.mxu0 0.0
        %1180 = vmatprep.subr.mxu0 0.0
        %1181 = vmatpush1.msra.mxu0 0.0
        %1182 = vmatprep.subr.mxu0 0.0
        %1183 = vmatpush1.msra.mxu0 0.0
        %1184 = vmatprep.subr.mxu0 0.0
        %1185 = vmatpush1.msra.mxu0 0.0
        %1186 = vmatprep.subr.mxu0 0.0
        %1187 = vmatpush1.msra.mxu0 0.0
        %1188 = vmatprep.subr.mxu0 0.0
        %1189 = vmatpush1.msra.mxu0 0.0
        %1190 = vmatprep.subr.mxu0 0.0
        %1191 = vmatpush1.msra.mxu0 0.0
        %1192 = vmatprep.subr.mxu0 0.0
        %1193 = vmatpush1.msra.mxu0 0.0
        %1194 = vmatprep.subr.mxu0 0.0
        %1195 = vmatpush1.msra.mxu0 0.0
        %1196 = vmatprep.subr.mxu0 0.0
        %1197 = vmatpush1.msra.mxu0 0.0
        %1198 = vmatprep.subr.mxu0 0.0
        %1199 = vmatpush1.msra.mxu0 0.0
        %1200 = vmatprep.subr.mxu0 0.0
        %1201 = vmatpush1.msra.mxu0 0.0
        %1202 = vmatprep.subr.mxu0 0.0
        %1203 = vmatpush1.msra.mxu0 0.0
        %1204 = vmatprep.subr.mxu0 0.0
        %1205 = vmatpush1.msra.mxu0 0.0
        %1206 = vmatprep.subr.mxu0 0.0
        %1207 = vmatpush1.msra.mxu0 0.0
        %1208 = vmatprep.subr.mxu0 0.0
        %1209 = vmatpush1.msra.mxu0 0.0
        %1210 = vmatprep.mubr.f32.mxu0 0.0
        %1211 = vmatmul.mubr.f32.gmra.mrb[0].mxu0 %v843
        %v1212 = vpop.f32.mrb[0].mxu0
        %v1213 = vadd.f32 %v1073, %v1212
        %v1214 = vpop.f32.mrb[0].mxu0
        %1215 = vdwg.mxu0
        %v1216 = vld [vmem:[#allocation13] sm:$0xff]
        %v1217 = vld [vmem:[#allocation13 + $0x8] sm:$0xff]
        %v1218 = vld [vmem:[#allocation13 + $0x10] sm:$0xff]
        %v1219 = vld [vmem:[#allocation13 + $0x18] sm:$0xff]
        %v1220 = vld [vmem:[#allocation13 + $0x20] sm:$0xff]
        %v1221 = vld [vmem:[#allocation13 + $0x28] sm:$0xff]
        %v1222 = vld [vmem:[#allocation13 + $0x30] sm:$0xff]
        %v1223 = vld [vmem:[#allocation13 + $0x38] sm:$0xff]
        %v1224 = vld [vmem:[#allocation13 + $0x40] sm:$0xff]
        %v1225 = vld [vmem:[#allocation13 + $0x48] sm:$0xff]
        %v1226 = vld [vmem:[#allocation13 + $0x50] sm:$0xff]
        %v1227 = vld [vmem:[#allocation13 + $0x58] sm:$0xff]
        %v1228 = vld [vmem:[#allocation13 + $0x60] sm:$0xff]
        %v1229 = vld [vmem:[#allocation13 + $0x68] sm:$0xff]
        %v1230 = vld [vmem:[#allocation13 + $0x70] sm:$0xff]
        %v1231 = vld [vmem:[#allocation13 + $0x78] sm:$0xff]
        %v1232 = vld [vmem:[#allocation13 + $0x80] sm:$0xff]
        %v1233 = vld [vmem:[#allocation13 + $0x88] sm:$0xff]
        %v1234 = vld [vmem:[#allocation13 + $0x90] sm:$0xff]
        %v1235 = vld [vmem:[#allocation13 + $0x98] sm:$0xff]
        %v1236 = vld [vmem:[#allocation13 + $0xa0] sm:$0xff]
        %v1237 = vld [vmem:[#allocation13 + $0xa8] sm:$0xff]
        %v1238 = vld [vmem:[#allocation13 + $0xb0] sm:$0xff]
        %v1239 = vld [vmem:[#allocation13 + $0xb8] sm:$0xff]
        %v1240 = vld [vmem:[#allocation13 + $0xc0] sm:$0xff]
        %v1241 = vld [vmem:[#allocation13 + $0xc8] sm:$0xff]
        %v1242 = vld [vmem:[#allocation13 + $0xd0] sm:$0xff]
        %v1243 = vld [vmem:[#allocation13 + $0xd8] sm:$0xff]
        %v1244 = vld [vmem:[#allocation13 + $0xe0] sm:$0xff]
        %v1245 = vld [vmem:[#allocation13 + $0xe8] sm:$0xff]
        %v1246 = vld [vmem:[#allocation13 + $0xf0] sm:$0xff]
        %v1247 = vld [vmem:[#allocation13 + $0xf8] sm:$0xff]
        %v1248 = vld [vmem:[#allocation14] sm:$0x1]
        %v1249 = vld [vmem:[#allocation14 + $0x1] sm:$0x1]
        %v1252 = vlaneseq
        %v1253 = vshrl.u32 %v1252, 7
        %v1254 = vsub.s32 0, %v1253
        %v1255 = vrot.slane %v1248, %v1254
        %v1256 = vlaneseq
        %v1257 = vshrl.u32 %v1256, 7
        %v1258 = vsub.s32 0, %v1257
        %v1259 = vrot.slane %v1249, %v1258
        %1262 = vmatprep.subr.mxu0 0.0
        %1263 = vmatpush1.msra.mxu0 %v1216
        %1264 = vmatprep.subr.mxu0 0.0
        %1265 = vmatpush1.msra.mxu0 %v1217
        %1266 = vmatprep.subr.mxu0 0.0
        %1267 = vmatpush1.msra.mxu0 %v1218
        %1268 = vmatprep.subr.mxu0 0.0
        %1269 = vmatpush1.msra.mxu0 %v1219
        %1270 = vmatprep.subr.mxu0 0.0
        %1271 = vmatpush1.msra.mxu0 %v1220
        %1272 = vmatprep.subr.mxu0 0.0
        %1273 = vmatpush1.msra.mxu0 %v1221
        %1274 = vmatprep.subr.mxu0 0.0
        %1275 = vmatpush1.msra.mxu0 %v1222
        %1276 = vmatprep.subr.mxu0 0.0
        %1277 = vmatpush1.msra.mxu0 %v1223
        %1278 = vmatprep.subr.mxu0 0.0
        %1279 = vmatpush1.msra.mxu0 %v1224
        %1280 = vmatprep.subr.mxu0 0.0
        %1281 = vmatpush1.msra.mxu0 %v1225
        %1282 = vmatprep.subr.mxu0 0.0
        %1283 = vmatpush1.msra.mxu0 %v1226
        %1284 = vmatprep.subr.mxu0 0.0
        %1285 = vmatpush1.msra.mxu0 %v1227
        %1286 = vmatprep.subr.mxu0 0.0
        %1287 = vmatpush1.msra.mxu0 %v1228
        %1288 = vmatprep.subr.mxu0 0.0
        %1289 = vmatpush1.msra.mxu0 %v1229
        %1290 = vmatprep.subr.mxu0 0.0
        %1291 = vmatpush1.msra.mxu0 %v1230
        %1292 = vmatprep.subr.mxu0 0.0
        %1293 = vmatpush1.msra.mxu0 %v1231
        %1294 = vmatprep.subr.mxu0 0.0
        %1295 = vmatpush1.msra.mxu0 0.0
        %1296 = vmatprep.subr.mxu0 0.0
        %1297 = vmatpush1.msra.mxu0 0.0
        %1298 = vmatprep.subr.mxu0 0.0
        %1299 = vmatpush1.msra.mxu0 0.0
        %1300 = vmatprep.subr.mxu0 0.0
        %1301 = vmatpush1.msra.mxu0 0.0
        %1302 = vmatprep.subr.mxu0 0.0
        %1303 = vmatpush1.msra.mxu0 0.0
        %1304 = vmatprep.subr.mxu0 0.0
        %1305 = vmatpush1.msra.mxu0 0.0
        %1306 = vmatprep.subr.mxu0 0.0
        %1307 = vmatpush1.msra.mxu0 0.0
        %1308 = vmatprep.subr.mxu0 0.0
        %1309 = vmatpush1.msra.mxu0 0.0
        %1310 = vmatprep.subr.mxu0 0.0
        %1311 = vmatpush1.msra.mxu0 0.0
        %1312 = vmatprep.subr.mxu0 0.0
        %1313 = vmatpush1.msra.mxu0 0.0
        %1314 = vmatprep.subr.mxu0 0.0
        %1315 = vmatpush1.msra.mxu0 0.0
        %1316 = vmatprep.subr.mxu0 0.0
        %1317 = vmatpush1.msra.mxu0 0.0
        %1318 = vmatprep.subr.mxu0 0.0
        %1319 = vmatpush1.msra.mxu0 0.0
        %1320 = vmatprep.subr.mxu0 0.0
        %1321 = vmatpush1.msra.mxu0 0.0
        %1322 = vmatprep.subr.mxu0 0.0
        %1323 = vmatpush1.msra.mxu0 0.0
        %1324 = vmatprep.subr.mxu0 0.0
        %1325 = vmatpush1.msra.mxu0 0.0
        %1326 = vmatprep.mubr.f32.mxu0 0.0
        %1327 = vmatmul.mubr.f32.gmra.mrb[0].mxu0 %v843
        %v1328 = vpop.f32.mrb[0].mxu0
        %v1329 = vadd.f32 %v1255, %v1328
        %v1330 = vpop.f32.mrb[0].mxu0
        %1331 = vdwg.mxu0
        %1332 = vmatprep.subr.mxu0 0.0
        %1333 = vmatpush1.msra.mxu0 %v1232
        %1334 = vmatprep.subr.mxu0 0.0
        %1335 = vmatpush1.msra.mxu0 %v1233
        %1336 = vmatprep.subr.mxu0 0.0
        %1337 = vmatpush1.msra.mxu0 %v1234
        %1338 = vmatprep.subr.mxu0 0.0
        %1339 = vmatpush1.msra.mxu0 %v1235
        %1340 = vmatprep.subr.mxu0 0.0
        %1341 = vmatpush1.msra.mxu0 %v1236
        %1342 = vmatprep.subr.mxu0 0.0
        %1343 = vmatpush1.msra.mxu0 %v1237
        %1344 = vmatprep.subr.mxu0 0.0
        %1345 = vmatpush1.msra.mxu0 %v1238
        %1346 = vmatprep.subr.mxu0 0.0
        %1347 = vmatpush1.msra.mxu0 %v1239
        %1348 = vmatprep.subr.mxu0 0.0
        %1349 = vmatpush1.msra.mxu0 %v1240
        %1350 = vmatprep.subr.mxu0 0.0
        %1351 = vmatpush1.msra.mxu0 %v1241
        %1352 = vmatprep.subr.mxu0 0.0
        %1353 = vmatpush1.msra.mxu0 %v1242
        %1354 = vmatprep.subr.mxu0 0.0
        %1355 = vmatpush1.msra.mxu0 %v1243
        %1356 = vmatprep.subr.mxu0 0.0
        %1357 = vmatpush1.msra.mxu0 %v1244
        %1358 = vmatprep.subr.mxu0 0.0
        %1359 = vmatpush1.msra.mxu0 %v1245
        %1360 = vmatprep.subr.mxu0 0.0
        %1361 = vmatpush1.msra.mxu0 %v1246
        %1362 = vmatprep.subr.mxu0 0.0
        %1363 = vmatpush1.msra.mxu0 %v1247
        %1364 = vmatprep.subr.mxu0 0.0
        %1365 = vmatpush1.msra.mxu0 0.0
        %1366 = vmatprep.subr.mxu0 0.0
        %1367 = vmatpush1.msra.mxu0 0.0
        %1368 = vmatprep.subr.mxu0 0.0
        %1369 = vmatpush1.msra.mxu0 0.0
        %1370 = vmatprep.subr.mxu0 0.0
        %1371 = vmatpush1.msra.mxu0 0.0
        %1372 = vmatprep.subr.mxu0 0.0
        %1373 = vmatpush1.msra.mxu0 0.0
        %1374 = vmatprep.subr.mxu0 0.0
        %1375 = vmatpush1.msra.mxu0 0.0
        %1376 = vmatprep.subr.mxu0 0.0
        %1377 = vmatpush1.msra.mxu0 0.0
        %1378 = vmatprep.subr.mxu0 0.0
        %1379 = vmatpush1.msra.mxu0 0.0
        %1380 = vmatprep.subr.mxu0 0.0
        %1381 = vmatpush1.msra.mxu0 0.0
        %1382 = vmatprep.subr.mxu0 0.0
        %1383 = vmatpush1.msra.mxu0 0.0
        %1384 = vmatprep.subr.mxu0 0.0
        %1385 = vmatpush1.msra.mxu0 0.0
        %1386 = vmatprep.subr.mxu0 0.0
        %1387 = vmatpush1.msra.mxu0 0.0
        %1388 = vmatprep.subr.mxu0 0.0
        %1389 = vmatpush1.msra.mxu0 0.0
        %1390 = vmatprep.subr.mxu0 0.0
        %1391 = vmatpush1.msra.mxu0 0.0
        %1392 = vmatprep.subr.mxu0 0.0
        %1393 = vmatpush1.msra.mxu0 0.0
        %1394 = vmatprep.subr.mxu0 0.0
        %1395 = vmatpush1.msra.mxu0 0.0
        %1396 = vmatprep.mubr.f32.mxu0 0.0
        %1397 = vmatmul.mubr.f32.gmra.mrb[0].mxu0 %v843
        %v1398 = vpop.f32.mrb[0].mxu0
        %v1399 = vadd.f32 %v1259, %v1398
        %v1400 = vpop.f32.mrb[0].mxu0
        %1401 = vdwg.mxu0
        %v1402 = vld [vmem:[%s722] sm:$0x1]
        %v1404 = vlaneseq
        %v1405 = vshrl.u32 %v1404, 7
        %v1406 = vsub.s32 0, %v1405
        %v1407 = vrot.slane %v1402, %v1406
        %vm1409 = vcmask 523264
        %v1411 = vsel %vm1409, %v957, 0
        %v1414 = vsel %vm1409, %v1143, 0
        %1416 = vmatprep.subr.mxu0 0.0
        %1417 = vmatpush1.xpose.msra.mxu0 %v1414
        %1418 = vmatprep.subr.mxu0 0.0
        %1419 = vmatpush1.xpose.msra.mxu0 0.0
        %1420 = vmatprep.subr.mxu0 0.0
        %1421 = vmatpush1.xpose.msra.mxu0 0.0
        %1422 = vmatprep.subr.mxu0 0.0
        %1423 = vmatpush1.xpose.msra.mxu0 0.0
        %1424 = vmatprep.subr.mxu0 0.0
        %1425 = vmatpush1.xpose.msra.mxu0 0.0
        %1426 = vmatprep.subr.mxu0 0.0
        %1427 = vmatpush1.xpose.msra.mxu0 0.0
        %1428 = vmatprep.subr.mxu0 0.0
        %1429 = vmatpush1.xpose.msra.mxu0 0.0
        %1430 = vmatprep.subr.mxu0 0.0
        %1431 = vmatpush1.xpose.msra.mxu0 0.0
        %1432 = vmatprep.subr.mxu0 0.0
        %1433 = vmatpush1.xpose.msra.mxu0 0.0
        %1434 = vmatprep.subr.mxu0 0.0
        %1435 = vmatpush1.xpose.msra.mxu0 0.0
        %1436 = vmatprep.subr.mxu0 0.0
        %1437 = vmatpush1.xpose.msra.mxu0 0.0
        %1438 = vmatprep.subr.mxu0 0.0
        %1439 = vmatpush1.xpose.msra.mxu0 0.0
        %1440 = vmatprep.subr.mxu0 0.0
        %1441 = vmatpush1.xpose.msra.mxu0 0.0
        %1442 = vmatprep.subr.mxu0 0.0
        %1443 = vmatpush1.xpose.msra.mxu0 0.0
        %1444 = vmatprep.subr.mxu0 0.0
        %1445 = vmatpush1.xpose.msra.mxu0 0.0
        %1446 = vmatprep.subr.mxu0 0.0
        %1447 = vmatpush1.xpose.msra.mxu0 0.0
        %1448 = vmatprep.subr.mxu0 0.0
        %1449 = vmatpush1.xpose.msra.mxu0 0.0
        %1450 = vmatprep.subr.mxu0 0.0
        %1451 = vmatpush1.xpose.msra.mxu0 0.0
        %1452 = vmatprep.subr.mxu0 0.0
        %1453 = vmatpush1.xpose.msra.mxu0 0.0
        %1454 = vmatprep.subr.mxu0 0.0
        %1455 = vmatpush1.xpose.msra.mxu0 0.0
        %1456 = vmatprep.subr.mxu0 0.0
        %1457 = vmatpush1.xpose.msra.mxu0 0.0
        %1458 = vmatprep.subr.mxu0 0.0
        %1459 = vmatpush1.xpose.msra.mxu0 0.0
        %1460 = vmatprep.subr.mxu0 0.0
        %1461 = vmatpush1.xpose.msra.mxu0 0.0
        %1462 = vmatprep.subr.mxu0 0.0
        %1463 = vmatpush1.xpose.msra.mxu0 0.0
        %1464 = vmatprep.subr.mxu0 0.0
        %1465 = vmatpush1.xpose.msra.mxu0 0.0
        %1466 = vmatprep.subr.mxu0 0.0
        %1467 = vmatpush1.xpose.msra.mxu0 0.0
        %1468 = vmatprep.subr.mxu0 0.0
        %1469 = vmatpush1.xpose.msra.mxu0 0.0
        %1470 = vmatprep.subr.mxu0 0.0
        %1471 = vmatpush1.xpose.msra.mxu0 0.0
        %1472 = vmatprep.subr.mxu0 0.0
        %1473 = vmatpush1.xpose.msra.mxu0 0.0
        %1474 = vmatprep.subr.mxu0 0.0
        %1475 = vmatpush1.xpose.msra.mxu0 0.0
        %1476 = vmatprep.subr.mxu0 0.0
        %1477 = vmatpush1.xpose.msra.mxu0 0.0
        %1478 = vmatprep.subr.mxu0 0.0
        %1479 = vmatpush1.xpose.msra.mxu0 0.0
        %1480 = vmatprep.mubr.f32.mxu0 0.0
        %1481 = vmatmul.mubr.f32.gmra.mrb[0].mxu0 %v1411
        %v1482 = vpop.f32.mrb[0].mxu0
        %v1483 = vadd.f32 %v1407, %v1482
        %v1484 = vpop.f32.mrb[0].mxu0
        %1485 = vdwg.mxu0
        %v1487 = vsel %vm1409, %v1027, 0
        %v1490 = vsel %vm1409, %v1213, 0
        %1492 = vmatprep.subr.mxu0 0.0
        %1493 = vmatpush1.xpose.msra.mxu0 %v1490
        %1494 = vmatprep.subr.mxu0 0.0
        %1495 = vmatpush1.xpose.msra.mxu0 0.0
        %1496 = vmatprep.subr.mxu0 0.0
        %1497 = vmatpush1.xpose.msra.mxu0 0.0
        %1498 = vmatprep.subr.mxu0 0.0
        %1499 = vmatpush1.xpose.msra.mxu0 0.0
        %1500 = vmatprep.subr.mxu0 0.0
        %1501 = vmatpush1.xpose.msra.mxu0 0.0
        %1502 = vmatprep.subr.mxu0 0.0
        %1503 = vmatpush1.xpose.msra.mxu0 0.0
        %1504 = vmatprep.subr.mxu0 0.0
        %1505 = vmatpush1.xpose.msra.mxu0 0.0
        %1506 = vmatprep.subr.mxu0 0.0
        %1507 = vmatpush1.xpose.msra.mxu0 0.0
        %1508 = vmatprep.subr.mxu0 0.0
        %1509 = vmatpush1.xpose.msra.mxu0 0.0
        %1510 = vmatprep.subr.mxu0 0.0
        %1511 = vmatpush1.xpose.msra.mxu0 0.0
        %1512 = vmatprep.subr.mxu0 0.0
        %1513 = vmatpush1.xpose.msra.mxu0 0.0
        %1514 = vmatprep.subr.mxu0 0.0
        %1515 = vmatpush1.xpose.msra.mxu0 0.0
        %1516 = vmatprep.subr.mxu0 0.0
        %1517 = vmatpush1.xpose.msra.mxu0 0.0
        %1518 = vmatprep.subr.mxu0 0.0
        %1519 = vmatpush1.xpose.msra.mxu0 0.0
        %1520 = vmatprep.subr.mxu0 0.0
        %1521 = vmatpush1.xpose.msra.mxu0 0.0
        %1522 = vmatprep.subr.mxu0 0.0
        %1523 = vmatpush1.xpose.msra.mxu0 0.0
        %1524 = vmatprep.subr.mxu0 0.0
        %1525 = vmatpush1.xpose.msra.mxu0 0.0
        %1526 = vmatprep.subr.mxu0 0.0
        %1527 = vmatpush1.xpose.msra.mxu0 0.0
        %1528 = vmatprep.subr.mxu0 0.0
        %1529 = vmatpush1.xpose.msra.mxu0 0.0
        %1530 = vmatprep.subr.mxu0 0.0
        %1531 = vmatpush1.xpose.msra.mxu0 0.0
        %1532 = vmatprep.subr.mxu0 0.0
        %1533 = vmatpush1.xpose.msra.mxu0 0.0
        %1534 = vmatprep.subr.mxu0 0.0
        %1535 = vmatpush1.xpose.msra.mxu0 0.0
        %1536 = vmatprep.subr.mxu0 0.0
        %1537 = vmatpush1.xpose.msra.mxu0 0.0
        %1538 = vmatprep.subr.mxu0 0.0
        %1539 = vmatpush1.xpose.msra.mxu0 0.0
        %1540 = vmatprep.subr.mxu0 0.0
        %1541 = vmatpush1.xpose.msra.mxu0 0.0
        %1542 = vmatprep.subr.mxu0 0.0
        %1543 = vmatpush1.xpose.msra.mxu0 0.0
        %1544 = vmatprep.subr.mxu0 0.0
        %1545 = vmatpush1.xpose.msra.mxu0 0.0
        %1546 = vmatprep.subr.mxu0 0.0
        %1547 = vmatpush1.xpose.msra.mxu0 0.0
        %1548 = vmatprep.subr.mxu0 0.0
        %1549 = vmatpush1.xpose.msra.mxu0 0.0
        %1550 = vmatprep.subr.mxu0 0.0
        %1551 = vmatpush1.xpose.msra.mxu0 0.0
        %1552 = vmatprep.subr.mxu0 0.0
        %1553 = vmatpush1.xpose.msra.mxu0 0.0
        %1554 = vmatprep.subr.mxu0 0.0
        %1555 = vmatpush1.xpose.msra.mxu0 0.0
        %1556 = vmatprep.mubr.f32.mxu0 0.0
        %1557 = vmatmul.mubr.f32.gmra.mrb[0].mxu0 %v1487
        %v1558 = vpop.f32.mrb[0].mxu0
        %v1559 = vadd.f32 %v1407, %v1558
        %v1560 = vpop.f32.mrb[0].mxu0
        %1561 = vdwg.mxu0
        %vm1562 = vcmask 64512
        %v1563 = vsel %vm1562, %v1483, -inf
        %1564 = vmax.xlane.f32.xlu0 %v1563
        %v1565 = vpop.xlane.xlu0 %1564
        %v1566 = vsel %vm1562, %v1559, -inf
        %1567 = vmax.xlane.f32.xlu0 %v1566
        %v1568 = vpop.xlane.xlu0 %1567
        %v1569 = vsub.f32 %v1483, %v1565
        %v1570 = vsub.f32 %v1559, %v1568
        %v1571 = vmul.f32 %v1569, 1.442695
        %v1572 = vpow.pop %v1571
        %v1573 = vmul.f32 %v1570, 1.442695
        %v1574 = vpow.pop %v1573
        %v1575 = vsel %vm1562, %v1572, 0.0
        %1576 = vadd.xlane.f32.xlu0 %v1575
        %v1577 = vpop.xlane.xlu0 %1576
        %v1578 = vsel %vm1562, %v1574, 0.0
        %1579 = vadd.xlane.f32.xlu0 %v1578
        %v1580 = vpop.xlane.xlu0 %1579
        %v1581 = vrcp.pop %v1577
        %v1582 = vrcp.pop %v1580
        %v1583 = vmul.f32 %v1572, %v1581
        %v1584 = vmul.f32 %v1574, %v1582
        %v1586 = vsel %vm1562, %v1583, 0
        %1588 = vmatprep.subr.mxu0 0.0
        %1589 = vmatpush1.msra.mxu0 %v1329
        %1590 = vmatprep.subr.mxu0 0.0
        %1591 = vmatpush1.msra.mxu0 0.0
        %1592 = vmatprep.subr.mxu0 0.0
        %1593 = vmatpush1.msra.mxu0 0.0
        %1594 = vmatprep.subr.mxu0 0.0
        %1595 = vmatpush1.msra.mxu0 0.0
        %1596 = vmatprep.subr.mxu0 0.0
        %1597 = vmatpush1.msra.mxu0 0.0
        %1598 = vmatprep.subr.mxu0 0.0
        %1599 = vmatpush1.msra.mxu0 0.0
        %1600 = vmatprep.subr.mxu0 0.0
        %1601 = vmatpush1.msra.mxu0 0.0
        %1602 = vmatprep.subr.mxu0 0.0
        %1603 = vmatpush1.msra.mxu0 0.0
        %1604 = vmatprep.subr.mxu0 0.0
        %1605 = vmatpush1.msra.mxu0 0.0
        %1606 = vmatprep.subr.mxu0 0.0
        %1607 = vmatpush1.msra.mxu0 0.0
        %1608 = vmatprep.subr.mxu0 0.0
        %1609 = vmatpush1.msra.mxu0 0.0
        %1610 = vmatprep.subr.mxu0 0.0
        %1611 = vmatpush1.msra.mxu0 0.0
        %1612 = vmatprep.subr.mxu0 0.0
        %1613 = vmatpush1.msra.mxu0 0.0
        %1614 = vmatprep.subr.mxu0 0.0
        %1615 = vmatpush1.msra.mxu0 0.0
        %1616 = vmatprep.subr.mxu0 0.0
        %1617 = vmatpush1.msra.mxu0 0.0
        %1618 = vmatprep.subr.mxu0 0.0
        %1619 = vmatpush1.msra.mxu0 0.0
        %1620 = vmatprep.subr.mxu0 0.0
        %1621 = vmatpush1.msra.mxu0 0.0
        %1622 = vmatprep.subr.mxu0 0.0
        %1623 = vmatpush1.msra.mxu0 0.0
        %1624 = vmatprep.subr.mxu0 0.0
        %1625 = vmatpush1.msra.mxu0 0.0
        %1626 = vmatprep.subr.mxu0 0.0
        %1627 = vmatpush1.msra.mxu0 0.0
        %1628 = vmatprep.subr.mxu0 0.0
        %1629 = vmatpush1.msra.mxu0 0.0
        %1630 = vmatprep.subr.mxu0 0.0
        %1631 = vmatpush1.msra.mxu0 0.0
        %1632 = vmatprep.subr.mxu0 0.0
        %1633 = vmatpush1.msra.mxu0 0.0
        %1634 = vmatprep.subr.mxu0 0.0
        %1635 = vmatpush1.msra.mxu0 0.0
        %1636 = vmatprep.subr.mxu0 0.0
        %1637 = vmatpush1.msra.mxu0 0.0
        %1638 = vmatprep.subr.mxu0 0.0
        %1639 = vmatpush1.msra.mxu0 0.0
        %1640 = vmatprep.subr.mxu0 0.0
        %1641 = vmatpush1.msra.mxu0 0.0
        %1642 = vmatprep.subr.mxu0 0.0
        %1643 = vmatpush1.msra.mxu0 0.0
        %1644 = vmatprep.subr.mxu0 0.0
        %1645 = vmatpush1.msra.mxu0 0.0
        %1646 = vmatprep.subr.mxu0 0.0
        %1647 = vmatpush1.msra.mxu0 0.0
        %1648 = vmatprep.subr.mxu0 0.0
        %1649 = vmatpush1.msra.mxu0 0.0
        %1650 = vmatprep.subr.mxu0 0.0
        %1651 = vmatpush1.msra.mxu0 0.0
        %1652 = vmatprep.mubr.f32.mxu0 0.0
        %1653 = vmatmul.mubr.f32.gmra.mrb[0].mxu0 %v1586
        %v1654 = vpop.f32.mrb[0].mxu0
        %v1655 = vadd.f32 0.0, %v1654
        %v1656 = vpop.f32.mrb[0].mxu0
        %1657 = vdwg.mxu0
        %v1659 = vsel %vm1562, %v1584, 0
        %1661 = vmatprep.subr.mxu0 0.0
        %1662 = vmatpush1.msra.mxu0 %v1399
        %1663 = vmatprep.subr.mxu0 0.0
        %1664 = vmatpush1.msra.mxu0 0.0
        %1665 = vmatprep.subr.mxu0 0.0
        %1666 = vmatpush1.msra.mxu0 0.0
        %1667 = vmatprep.subr.mxu0 0.0
        %1668 = vmatpush1.msra.mxu0 0.0
        %1669 = vmatprep.subr.mxu0 0.0
        %1670 = vmatpush1.msra.mxu0 0.0
        %1671 = vmatprep.subr.mxu0 0.0
        %1672 = vmatpush1.msra.mxu0 0.0
        %1673 = vmatprep.subr.mxu0 0.0
        %1674 = vmatpush1.msra.mxu0 0.0
        %1675 = vmatprep.subr.mxu0 0.0
        %1676 = vmatpush1.msra.mxu0 0.0
        %1677 = vmatprep.subr.mxu0 0.0
        %1678 = vmatpush1.msra.mxu0 0.0
        %1679 = vmatprep.subr.mxu0 0.0
        %1680 = vmatpush1.msra.mxu0 0.0
        %1681 = vmatprep.subr.mxu0 0.0
        %1682 = vmatpush1.msra.mxu0 0.0
        %1683 = vmatprep.subr.mxu0 0.0
        %1684 = vmatpush1.msra.mxu0 0.0
        %1685 = vmatprep.subr.mxu0 0.0
        %1686 = vmatpush1.msra.mxu0 0.0
        %1687 = vmatprep.subr.mxu0 0.0
        %1688 = vmatpush1.msra.mxu0 0.0
        %1689 = vmatprep.subr.mxu0 0.0
        %1690 = vmatpush1.msra.mxu0 0.0
        %1691 = vmatprep.subr.mxu0 0.0
        %1692 = vmatpush1.msra.mxu0 0.0
        %1693 = vmatprep.subr.mxu0 0.0
        %1694 = vmatpush1.msra.mxu0 0.0
        %1695 = vmatprep.subr.mxu0 0.0
        %1696 = vmatpush1.msra.mxu0 0.0
        %1697 = vmatprep.subr.mxu0 0.0
        %1698 = vmatpush1.msra.mxu0 0.0
        %1699 = vmatprep.subr.mxu0 0.0
        %1700 = vmatpush1.msra.mxu0 0.0
        %1701 = vmatprep.subr.mxu0 0.0
        %1702 = vmatpush1.msra.mxu0 0.0
        %1703 = vmatprep.subr.mxu0 0.0
        %1704 = vmatpush1.msra.mxu0 0.0
        %1705 = vmatprep.subr.mxu0 0.0
        %1706 = vmatpush1.msra.mxu0 0.0
        %1707 = vmatprep.subr.mxu0 0.0
        %1708 = vmatpush1.msra.mxu0 0.0
        %1709 = vmatprep.subr.mxu0 0.0
        %1710 = vmatpush1.msra.mxu0 0.0
        %1711 = vmatprep.subr.mxu0 0.0
        %1712 = vmatpush1.msra.mxu0 0.0
        %1713 = vmatprep.subr.mxu0 0.0
        %1714 = vmatpush1.msra.mxu0 0.0
        %1715 = vmatprep.subr.mxu0 0.0
        %1716 = vmatpush1.msra.mxu0 0.0
        %1717 = vmatprep.subr.mxu0 0.0
        %1718 = vmatpush1.msra.mxu0 0.0
        %1719 = vmatprep.subr.mxu0 0.0
        %1720 = vmatpush1.msra.mxu0 0.0
        %1721 = vmatprep.subr.mxu0 0.0
        %1722 = vmatpush1.msra.mxu0 0.0
        %1723 = vmatprep.subr.mxu0 0.0
        %1724 = vmatpush1.msra.mxu0 0.0
        %1725 = vmatprep.mubr.f32.mxu0 0.0
        %1726 = vmatmul.mubr.f32.gmra.mrb[0].mxu0 %v1659
        %v1727 = vpop.f32.mrb[0].mxu0
        %v1728 = vadd.f32 0.0, %v1727
        %v1729 = vpop.f32.mrb[0].mxu0
        %1730 = vdwg.mxu0
        %v1731 = vld [vmem:[#allocation16] sm:$0xff]
        %v1732 = vld [vmem:[#allocation16 + $0x8] sm:$0xff]
        %v1733 = vld [vmem:[#allocation16 + $0x10] sm:$0xff]
        %v1734 = vld [vmem:[#allocation16 + $0x18] sm:$0xff]
        %v1735 = vld [vmem:[#allocation16 + $0x20] sm:$0xff]
        %v1736 = vld [vmem:[#allocation16 + $0x28] sm:$0xff]
        %v1737 = vld [vmem:[#allocation16 + $0x30] sm:$0xff]
        %v1738 = vld [vmem:[#allocation16 + $0x38] sm:$0xff]
        %v1739 = vld [vmem:[#allocation16 + $0x40] sm:$0xff]
        %v1740 = vld [vmem:[#allocation16 + $0x48] sm:$0xff]
        %v1741 = vld [vmem:[#allocation16 + $0x50] sm:$0xff]
        %v1742 = vld [vmem:[#allocation16 + $0x58] sm:$0xff]
        %v1743 = vld [vmem:[#allocation16 + $0x60] sm:$0xff]
        %v1744 = vld [vmem:[#allocation16 + $0x68] sm:$0xff]
        %v1745 = vld [vmem:[#allocation16 + $0x70] sm:$0xff]
        %v1746 = vld [vmem:[#allocation16 + $0x78] sm:$0xff]
        %v1748 = vsel %vm1409, %v1655, 0
        %1750 = vmatprep.subr.mxu0 0.0
        %1751 = vmatpush1.msra.mxu0 %v1731
        %1752 = vmatprep.subr.mxu0 0.0
        %1753 = vmatpush1.msra.mxu0 %v1732
        %1754 = vmatprep.subr.mxu0 0.0
        %1755 = vmatpush1.msra.mxu0 %v1733
        %1756 = vmatprep.subr.mxu0 0.0
        %1757 = vmatpush1.msra.mxu0 %v1734
        %1758 = vmatprep.subr.mxu0 0.0
        %1759 = vmatpush1.msra.mxu0 %v1735
        %1760 = vmatprep.subr.mxu0 0.0
        %1761 = vmatpush1.msra.mxu0 %v1736
        %1762 = vmatprep.subr.mxu0 0.0
        %1763 = vmatpush1.msra.mxu0 %v1737
        %1764 = vmatprep.subr.mxu0 0.0
        %1765 = vmatpush1.msra.mxu0 %v1738
        %1766 = vmatprep.subr.mxu0 0.0
        %1767 = vmatpush1.msra.mxu0 0.0
        %1768 = vmatprep.subr.mxu0 0.0
        %1769 = vmatpush1.msra.mxu0 0.0
        %1770 = vmatprep.subr.mxu0 0.0
        %1771 = vmatpush1.msra.mxu0 0.0
        %1772 = vmatprep.subr.mxu0 0.0
        %1773 = vmatpush1.msra.mxu0 0.0
        %1774 = vmatprep.subr.mxu0 0.0
        %1775 = vmatpush1.msra.mxu0 0.0
        %1776 = vmatprep.subr.mxu0 0.0
        %1777 = vmatpush1.msra.mxu0 0.0
        %1778 = vmatprep.subr.mxu0 0.0
        %1779 = vmatpush1.msra.mxu0 0.0
        %1780 = vmatprep.subr.mxu0 0.0
        %1781 = vmatpush1.msra.mxu0 0.0
        %1782 = vmatprep.subr.mxu0 0.0
        %1783 = vmatpush1.msra.mxu0 0.0
        %1784 = vmatprep.subr.mxu0 0.0
        %1785 = vmatpush1.msra.mxu0 0.0
        %1786 = vmatprep.subr.mxu0 0.0
        %1787 = vmatpush1.msra.mxu0 0.0
        %1788 = vmatprep.subr.mxu0 0.0
        %1789 = vmatpush1.msra.mxu0 0.0
        %1790 = vmatprep.subr.mxu0 0.0
        %1791 = vmatpush1.msra.mxu0 0.0
        %1792 = vmatprep.subr.mxu0 0.0
        %1793 = vmatpush1.msra.mxu0 0.0
        %1794 = vmatprep.subr.mxu0 0.0
        %1795 = vmatpush1.msra.mxu0 0.0
        %1796 = vmatprep.subr.mxu0 0.0
        %1797 = vmatpush1.msra.mxu0 0.0
        %1798 = vmatprep.subr.mxu0 0.0
        %1799 = vmatpush1.msra.mxu0 0.0
        %1800 = vmatprep.subr.mxu0 0.0
        %1801 = vmatpush1.msra.mxu0 0.0
        %1802 = vmatprep.subr.mxu0 0.0
        %1803 = vmatpush1.msra.mxu0 0.0
        %1804 = vmatprep.subr.mxu0 0.0
        %1805 = vmatpush1.msra.mxu0 0.0
        %1806 = vmatprep.subr.mxu0 0.0
        %1807 = vmatpush1.msra.mxu0 0.0
        %1808 = vmatprep.subr.mxu0 0.0
        %1809 = vmatpush1.msra.mxu0 0.0
        %1810 = vmatprep.subr.mxu0 0.0
        %1811 = vmatpush1.msra.mxu0 0.0
        %1812 = vmatprep.subr.mxu0 0.0
        %1813 = vmatpush1.msra.mxu0 0.0
        %1814 = vmatprep.mubr.f32.mxu0 0.0
        %1815 = vmatmul.mubr.f32.gmra.mrb[0].mxu0 %v1748
        %v1816 = vpop.f32.mrb[0].mxu0
        %v1817 = vadd.f32 0.0, %v1816
        %v1818 = vpop.f32.mrb[0].mxu0
        %1819 = vdwg.mxu0
        %v1821 = vsel %vm1409, %v1728, 0
        %1823 = vmatprep.subr.mxu0 0.0
        %1824 = vmatpush1.msra.mxu0 %v1739
        %1825 = vmatprep.subr.mxu0 0.0
        %1826 = vmatpush1.msra.mxu0 %v1740
        %1827 = vmatprep.subr.mxu0 0.0
        %1828 = vmatpush1.msra.mxu0 %v1741
        %1829 = vmatprep.subr.mxu0 0.0
        %1830 = vmatpush1.msra.mxu0 %v1742
        %1831 = vmatprep.subr.mxu0 0.0
        %1832 = vmatpush1.msra.mxu0 %v1743
        %1833 = vmatprep.subr.mxu0 0.0
        %1834 = vmatpush1.msra.mxu0 %v1744
        %1835 = vmatprep.subr.mxu0 0.0
        %1836 = vmatpush1.msra.mxu0 %v1745
        %1837 = vmatprep.subr.mxu0 0.0
        %1838 = vmatpush1.msra.mxu0 %v1746
        %1839 = vmatprep.subr.mxu0 0.0
        %1840 = vmatpush1.msra.mxu0 0.0
        %1841 = vmatprep.subr.mxu0 0.0
        %1842 = vmatpush1.msra.mxu0 0.0
        %1843 = vmatprep.subr.mxu0 0.0
        %1844 = vmatpush1.msra.mxu0 0.0
        %1845 = vmatprep.subr.mxu0 0.0
        %1846 = vmatpush1.msra.mxu0 0.0
        %1847 = vmatprep.subr.mxu0 0.0
        %1848 = vmatpush1.msra.mxu0 0.0
        %1849 = vmatprep.subr.mxu0 0.0
        %1850 = vmatpush1.msra.mxu0 0.0
        %1851 = vmatprep.subr.mxu0 0.0
        %1852 = vmatpush1.msra.mxu0 0.0
        %1853 = vmatprep.subr.mxu0 0.0
        %1854 = vmatpush1.msra.mxu0 0.0
        %1855 = vmatprep.subr.mxu0 0.0
        %1856 = vmatpush1.msra.mxu0 0.0
        %1857 = vmatprep.subr.mxu0 0.0
        %1858 = vmatpush1.msra.mxu0 0.0
        %1859 = vmatprep.subr.mxu0 0.0
        %1860 = vmatpush1.msra.mxu0 0.0
        %1861 = vmatprep.subr.mxu0 0.0
        %1862 = vmatpush1.msra.mxu0 0.0
        %1863 = vmatprep.subr.mxu0 0.0
        %1864 = vmatpush1.msra.mxu0 0.0
        %1865 = vmatprep.subr.mxu0 0.0
        %1866 = vmatpush1.msra.mxu0 0.0
        %1867 = vmatprep.subr.mxu0 0.0
        %1868 = vmatpush1.msra.mxu0 0.0
        %1869 = vmatprep.subr.mxu0 0.0
        %1870 = vmatpush1.msra.mxu0 0.0
        %1871 = vmatprep.subr.mxu0 0.0
        %1872 = vmatpush1.msra.mxu0 0.0
        %1873 = vmatprep.subr.mxu0 0.0
        %1874 = vmatpush1.msra.mxu0 0.0
        %1875 = vmatprep.subr.mxu0 0.0
        %1876 = vmatpush1.msra.mxu0 0.0
        %1877 = vmatprep.subr.mxu0 0.0
        %1878 = vmatpush1.msra.mxu0 0.0
        %1879 = vmatprep.subr.mxu0 0.0
        %1880 = vmatpush1.msra.mxu0 0.0
        %1881 = vmatprep.subr.mxu0 0.0
        %1882 = vmatpush1.msra.mxu0 0.0
        %1883 = vmatprep.subr.mxu0 0.0
        %1884 = vmatpush1.msra.mxu0 0.0
        %1885 = vmatprep.subr.mxu0 0.0
        %1886 = vmatpush1.msra.mxu0 0.0
        %1887 = vmatprep.mubr.f32.mxu0 0.0
        %1888 = vmatmul.mubr.f32.gmra.mrb[0].mxu0 %v1821
        %v1889 = vpop.f32.mrb[0].mxu0
        %v1890 = vadd.f32 0.0, %v1889
        %v1891 = vpop.f32.mrb[0].mxu0
        %1892 = vdwg.mxu0
        %v1893 = vadd.f32 %v1817, %v1890
        %v1894 = vld [vmem:[#allocation17] sm:$0x1]
        %v1896 = vlaneseq
        %v1897 = vshrl.u32 %v1896, 7
        %v1898 = vsub.s32 0, %v1897
        %v1899 = vrot.slane %v1894, %v1898
        %v1901 = vadd.f32 %v1893, %v1899
        %v1902 = vadd.f32 %v843, %v1901
        %v1903 = vld [vmem:[#allocation25] sm:$0x1]
        %v1904 = vld [vmem:[#allocation26] sm:$0x1]
        %1905 = vadd.xlane.f32.xlu0 %v1902
        %v1906 = vpop.xlane.xlu0 %1905
        %v1907 = vrcp.pop 128.0
        %v1908 = vmul.f32 %v1906, %v1907
        %v1909 = vsub.f32 %v1902, %v1908
        %v1910 = vmul.f32 %v1909, %v1909
        %1911 = vadd.xlane.f32.xlu0 %v1910
        %v1912 = vpop.xlane.xlu0 %1911
        %v1913 = vmul.f32 %v1912, %v1907
        %v1914 = vadd.f32 %v1913, 1e-05
        %v1915 = vrsqrt.pop %v1914
        %v1916 = vmul.f32 %v1909, %v1915
        %v1918 = vlaneseq
        %v1919 = vshrl.u32 %v1918, 7
        %v1920 = vsub.s32 0, %v1919
        %v1921 = vrot.slane %v1903, %v1920
        %v1923 = vmul.f32 %v1916, %v1921
        %v1925 = vlaneseq
        %v1926 = vshrl.u32 %v1925, 7
        %v1927 = vsub.s32 0, %v1926
        %v1928 = vrot.slane %v1904, %v1927
        %v1930 = vadd.f32 %v1923, %v1928
        %v1931 = vld [vmem:[#allocation19] sm:$0xff]
        %v1932 = vld [vmem:[#allocation19 + $0x8] sm:$0xff]
        %v1933 = vld [vmem:[#allocation19 + $0x10] sm:$0xff]
        %v1934 = vld [vmem:[#allocation19 + $0x18] sm:$0xff]
        %v1935 = vld [vmem:[#allocation19 + $0x20] sm:$0xff]
        %v1936 = vld [vmem:[#allocation19 + $0x28] sm:$0xff]
        %v1937 = vld [vmem:[#allocation19 + $0x30] sm:$0xff]
        %v1938 = vld [vmem:[#allocation19 + $0x38] sm:$0xff]
        %v1939 = vld [vmem:[#allocation19 + $0x40] sm:$0xff]
        %v1940 = vld [vmem:[#allocation19 + $0x48] sm:$0xff]
        %v1941 = vld [vmem:[#allocation19 + $0x50] sm:$0xff]
        %v1942 = vld [vmem:[#allocation19 + $0x58] sm:$0xff]
        %v1943 = vld [vmem:[#allocation19 + $0x60] sm:$0xff]
        %v1944 = vld [vmem:[#allocation19 + $0x68] sm:$0xff]
        %v1945 = vld [vmem:[#allocation19 + $0x70] sm:$0xff]
        %v1946 = vld [vmem:[#allocation19 + $0x78] sm:$0xff]
        %v1947 = vld [vmem:[#allocation19 + $0x80] sm:$0xff]
        %v1948 = vld [vmem:[#allocation19 + $0x88] sm:$0xff]
        %v1949 = vld [vmem:[#allocation19 + $0x90] sm:$0xff]
        %v1950 = vld [vmem:[#allocation19 + $0x98] sm:$0xff]
        %v1951 = vld [vmem:[#allocation19 + $0xa0] sm:$0xff]
        %v1952 = vld [vmem:[#allocation19 + $0xa8] sm:$0xff]
        %v1953 = vld [vmem:[#allocation19 + $0xb0] sm:$0xff]
        %v1954 = vld [vmem:[#allocation19 + $0xb8] sm:$0xff]
        %v1955 = vld [vmem:[#allocation19 + $0xc0] sm:$0xff]
        %v1956 = vld [vmem:[#allocation19 + $0xc8] sm:$0xff]
        %v1957 = vld [vmem:[#allocation19 + $0xd0] sm:$0xff]
        %v1958 = vld [vmem:[#allocation19 + $0xd8] sm:$0xff]
        %v1959 = vld [vmem:[#allocation19 + $0xe0] sm:$0xff]
        %v1960 = vld [vmem:[#allocation19 + $0xe8] sm:$0xff]
        %v1961 = vld [vmem:[#allocation19 + $0xf0] sm:$0xff]
        %v1962 = vld [vmem:[#allocation19 + $0xf8] sm:$0xff]
        %v1963 = vld [vmem:[#allocation19 + $0x100] sm:$0xff]
        %v1964 = vld [vmem:[#allocation19 + $0x108] sm:$0xff]
        %v1965 = vld [vmem:[#allocation19 + $0x110] sm:$0xff]
        %v1966 = vld [vmem:[#allocation19 + $0x118] sm:$0xff]
        %v1967 = vld [vmem:[#allocation19 + $0x120] sm:$0xff]
        %v1968 = vld [vmem:[#allocation19 + $0x128] sm:$0xff]
        %v1969 = vld [vmem:[#allocation19 + $0x130] sm:$0xff]
        %v1970 = vld [vmem:[#allocation19 + $0x138] sm:$0xff]
        %v1971 = vld [vmem:[#allocation19 + $0x140] sm:$0xff]
        %v1972 = vld [vmem:[#allocation19 + $0x148] sm:$0xff]
        %v1973 = vld [vmem:[#allocation19 + $0x150] sm:$0xff]
        %v1974 = vld [vmem:[#allocation19 + $0x158] sm:$0xff]
        %v1975 = vld [vmem:[#allocation19 + $0x160] sm:$0xff]
        %v1976 = vld [vmem:[#allocation19 + $0x168] sm:$0xff]
        %v1977 = vld [vmem:[#allocation19 + $0x170] sm:$0xff]
        %v1978 = vld [vmem:[#allocation19 + $0x178] sm:$0xff]
        %v1979 = vld [vmem:[#allocation19 + $0x180] sm:$0xff]
        %v1980 = vld [vmem:[#allocation19 + $0x188] sm:$0xff]
        %v1981 = vld [vmem:[#allocation19 + $0x190] sm:$0xff]
        %v1982 = vld [vmem:[#allocation19 + $0x198] sm:$0xff]
        %v1983 = vld [vmem:[#allocation19 + $0x1a0] sm:$0xff]
        %v1984 = vld [vmem:[#allocation19 + $0x1a8] sm:$0xff]
        %v1985 = vld [vmem:[#allocation19 + $0x1b0] sm:$0xff]
        %v1986 = vld [vmem:[#allocation19 + $0x1b8] sm:$0xff]
        %v1987 = vld [vmem:[#allocation19 + $0x1c0] sm:$0xff]
        %v1988 = vld [vmem:[#allocation19 + $0x1c8] sm:$0xff]
        %v1989 = vld [vmem:[#allocation19 + $0x1d0] sm:$0xff]
        %v1990 = vld [vmem:[#allocation19 + $0x1d8] sm:$0xff]
        %v1991 = vld [vmem:[#allocation19 + $0x1e0] sm:$0xff]
        %v1992 = vld [vmem:[#allocation19 + $0x1e8] sm:$0xff]
        %v1993 = vld [vmem:[#allocation19 + $0x1f0] sm:$0xff]
        %v1994 = vld [vmem:[#allocation19 + $0x1f8] sm:$0xff]
        %v1995 = vld [vmem:[#allocation20] sm:$0xf]
        %v1997 = vlaneseq
        %v1998 = vshrl.u32 %v1997, 7
        %v1999 = vsub.s32 0, %v1998
        %v2000 = vrot.slane %v1995, %v1999
        %v2001 = vlaneseq
        %v2002 = vshrl.u32 %v2001, 7
        %v2003 = vsub.s32 1, %v2002
        %v2004 = vrot.slane %v1995, %v2003
        %v2005 = vlaneseq
        %v2006 = vshrl.u32 %v2005, 7
        %v2007 = vsub.s32 2, %v2006
        %v2008 = vrot.slane %v1995, %v2007
        %v2009 = vlaneseq
        %v2010 = vshrl.u32 %v2009, 7
        %v2011 = vsub.s32 3, %v2010
        %v2012 = vrot.slane %v1995, %v2011
        %2017 = vmatprep.subr.mxu0 %v1932
        %2018 = vmatpush1.msra.mxu0 %v1931
        %2019 = vmatprep.subr.mxu0 %v1936
        %2020 = vmatpush1.msra.mxu0 %v1935
        %2021 = vmatprep.subr.mxu0 %v1940
        %2022 = vmatpush1.msra.mxu0 %v1939
        %2023 = vmatprep.subr.mxu0 %v1944
        %2024 = vmatpush1.msra.mxu0 %v1943
        %2025 = vmatprep.subr.mxu0 %v1948
        %2026 = vmatpush1.msra.mxu0 %v1947
        %2027 = vmatprep.subr.mxu0 %v1952
        %2028 = vmatpush1.msra.mxu0 %v1951
        %2029 = vmatprep.subr.mxu0 %v1956
        %2030 = vmatpush1.msra.mxu0 %v1955
        %2031 = vmatprep.subr.mxu0 %v1960
        %2032 = vmatpush1.msra.mxu0 %v1959
        %2033 = vmatprep.subr.mxu0 %v1964
        %2034 = vmatpush1.msra.mxu0 %v1963
        %2035 = vmatprep.subr.mxu0 %v1968
        %2036 = vmatpush1.msra.mxu0 %v1967
        %2037 = vmatprep.subr.mxu0 %v1972
        %2038 = vmatpush1.msra.mxu0 %v1971
        %2039 = vmatprep.subr.mxu0 %v1976
        %2040 = vmatpush1.msra.mxu0 %v1975
        %2041 = vmatprep.subr.mxu0 %v1980
        %2042 = vmatpush1.msra.mxu0 %v1979
        %2043 = vmatprep.subr.mxu0 %v1984
        %2044 = vmatpush1.msra.mxu0 %v1983
        %2045 = vmatprep.subr.mxu0 %v1988
        %2046 = vmatpush1.msra.mxu0 %v1987
        %2047 = vmatprep.subr.mxu0 %v1992
        %2048 = vmatpush1.msra.mxu0 %v1991
        %2049 = vmatprep.subr.mxu0 0.0
        %2050 = vmatpush1.msra.mxu0 0.0
        %2051 = vmatprep.subr.mxu0 0.0
        %2052 = vmatpush1.msra.mxu0 0.0
        %2053 = vmatprep.subr.mxu0 0.0
        %2054 = vmatpush1.msra.mxu0 0.0
        %2055 = vmatprep.subr.mxu0 0.0
        %2056 = vmatpush1.msra.mxu0 0.0
        %2057 = vmatprep.subr.mxu0 0.0
        %2058 = vmatpush1.msra.mxu0 0.0
        %2059 = vmatprep.subr.mxu0 0.0
        %2060 = vmatpush1.msra.mxu0 0.0
        %2061 = vmatprep.subr.mxu0 0.0
        %2062 = vmatpush1.msra.mxu0 0.0
        %2063 = vmatprep.subr.mxu0 0.0
        %2064 = vmatpush1.msra.mxu0 0.0
        %2065 = vmatprep.subr.mxu0 0.0
        %2066 = vmatpush1.msra.mxu0 0.0
        %2067 = vmatprep.subr.mxu0 0.0
        %2068 = vmatpush1.msra.mxu0 0.0
        %2069 = vmatprep.subr.mxu0 0.0
        %2070 = vmatpush1.msra.mxu0 0.0
        %2071 = vmatprep.subr.mxu0 0.0
        %2072 = vmatpush1.msra.mxu0 0.0
        %2073 = vmatprep.subr.mxu0 0.0
        %2074 = vmatpush1.msra.mxu0 0.0
        %2075 = vmatprep.subr.mxu0 0.0
        %2076 = vmatpush1.msra.mxu0 0.0
        %2077 = vmatprep.subr.mxu0 0.0
        %2078 = vmatpush1.msra.mxu0 0.0
        %2079 = vmatprep.subr.mxu0 0.0
        %2080 = vmatpush1.msra.mxu0 0.0
        %2081 = vmatprep.mubr.f32.mxu0 0.0
        %2082 = vmatmul.mubr.f32.gmra.mrb[0].mxu0 %v1930
        %v2083 = vpop.f32.mrb[0].mxu0
        %v2084 = vadd.f32 %v2000, %v2083
        %v2085 = vpop.f32.mrb[0].mxu0
        %v2086 = vadd.f32 %v2004, %v2085
        %2087 = vdwg.mxu0
        %2088 = vmatprep.subr.mxu0 %v1934
        %2089 = vmatpush1.msra.mxu0 %v1933
        %2090 = vmatprep.subr.mxu0 %v1938
        %2091 = vmatpush1.msra.mxu0 %v1937
        %2092 = vmatprep.subr.mxu0 %v1942
        %2093 = vmatpush1.msra.mxu0 %v1941
        %2094 = vmatprep.subr.mxu0 %v1946
        %2095 = vmatpush1.msra.mxu0 %v1945
        %2096 = vmatprep.subr.mxu0 %v1950
        %2097 = vmatpush1.msra.mxu0 %v1949
        %2098 = vmatprep.subr.mxu0 %v1954
        %2099 = vmatpush1.msra.mxu0 %v1953
        %2100 = vmatprep.subr.mxu0 %v1958
        %2101 = vmatpush1.msra.mxu0 %v1957
        %2102 = vmatprep.subr.mxu0 %v1962
        %2103 = vmatpush1.msra.mxu0 %v1961
        %2104 = vmatprep.subr.mxu0 %v1966
        %2105 = vmatpush1.msra.mxu0 %v1965
        %2106 = vmatprep.subr.mxu0 %v1970
        %2107 = vmatpush1.msra.mxu0 %v1969
        %2108 = vmatprep.subr.mxu0 %v1974
        %2109 = vmatpush1.msra.mxu0 %v1973
        %2110 = vmatprep.subr.mxu0 %v1978
        %2111 = vmatpush1.msra.mxu0 %v1977
        %2112 = vmatprep.subr.mxu0 %v1982
        %2113 = vmatpush1.msra.mxu0 %v1981
        %2114 = vmatprep.subr.mxu0 %v1986
        %2115 = vmatpush1.msra.mxu0 %v1985
        %2116 = vmatprep.subr.mxu0 %v1990
        %2117 = vmatpush1.msra.mxu0 %v1989
        %2118 = vmatprep.subr.mxu0 %v1994
        %2119 = vmatpush1.msra.mxu0 %v1993
        %2120 = vmatprep.subr.mxu0 0.0
        %2121 = vmatpush1.msra.mxu0 0.0
        %2122 = vmatprep.subr.mxu0 0.0
        %2123 = vmatpush1.msra.mxu0 0.0
        %2124 = vmatprep.subr.mxu0 0.0
        %2125 = vmatpush1.msra.mxu0 0.0
        %2126 = vmatprep.subr.mxu0 0.0
        %2127 = vmatpush1.msra.mxu0 0.0
        %2128 = vmatprep.subr.mxu0 0.0
        %2129 = vmatpush1.msra.mxu0 0.0
        %2130 = vmatprep.subr.mxu0 0.0
        %2131 = vmatpush1.msra.mxu0 0.0
        %2132 = vmatprep.subr.mxu0 0.0
        %2133 = vmatpush1.msra.mxu0 0.0
        %2134 = vmatprep.subr.mxu0 0.0
        %2135 = vmatpush1.msra.mxu0 0.0
        %2136 = vmatprep.subr.mxu0 0.0
        %2137 = vmatpush1.msra.mxu0 0.0
        %2138 = vmatprep.subr.mxu0 0.0
        %2139 = vmatpush1.msra.mxu0 0.0
        %2140 = vmatprep.subr.mxu0 0.0
        %2141 = vmatpush1.msra.mxu0 0.0
        %2142 = vmatprep.subr.mxu0 0.0
        %2143 = vmatpush1.msra.mxu0 0.0
        %2144 = vmatprep.subr.mxu0 0.0
        %2145 = vmatpush1.msra.mxu0 0.0
        %2146 = vmatprep.subr.mxu0 0.0
        %2147 = vmatpush1.msra.mxu0 0.0
        %2148 = vmatprep.subr.mxu0 0.0
        %2149 = vmatpush1.msra.mxu0 0.0
        %2150 = vmatprep.subr.mxu0 0.0
        %2151 = vmatpush1.msra.mxu0 0.0
        %2152 = vmatprep.mubr.f32.mxu0 0.0
        %2153 = vmatmul.mubr.f32.gmra.mrb[0].mxu0 %v1930
        %v2154 = vpop.f32.mrb[0].mxu0
        %v2155 = vadd.f32 %v2008, %v2154
        %v2156 = vpop.f32.mrb[0].mxu0
        %v2157 = vadd.f32 %v2012, %v2156
        %2158 = vdwg.mxu0
        %v2159 = vmul.f32 %v2084, 0.5
        %v2160 = vmul.f32 %v2086, 0.5
        %v2161 = vmul.f32 %v2155, 0.5
        %v2162 = vmul.f32 %v2157, 0.5
        %v2163 = vmul.f32 %v2084, 0.70710677
        %v2164 = vmul.f32 %v2086, 0.70710677
        %v2165 = vmul.f32 %v2155, 0.70710677
        %v2166 = vmul.f32 %v2157, 0.70710677
        %v2167 = verf.f32.pop %v2163
        %v2168 = verf.f32.pop %v2164
        %v2169 = verf.f32.pop %v2165
        %v2170 = verf.f32.pop %v2166
        %v2171 = vadd.f32 %v2167, 1.0
        %v2172 = vadd.f32 %v2168, 1.0
        %v2173 = vadd.f32 %v2169, 1.0
        %v2174 = vadd.f32 %v2170, 1.0
        %v2175 = vmul.f32 %v2159, %v2171
        %v2176 = vmul.f32 %v2160, %v2172
        %v2177 = vmul.f32 %v2161, %v2173
        %v2178 = vmul.f32 %v2162, %v2174
        %v2179 = vld [vmem:[#allocation22] sm:$0xff]
        %v2180 = vld [vmem:[#allocation22 + $0x8] sm:$0xff]
        %v2181 = vld [vmem:[#allocation22 + $0x10] sm:$0xff]
        %v2182 = vld [vmem:[#allocation22 + $0x18] sm:$0xff]
        %v2183 = vld [vmem:[#allocation22 + $0x20] sm:$0xff]
        %v2184 = vld [vmem:[#allocation22 + $0x28] sm:$0xff]
        %v2185 = vld [vmem:[#allocation22 + $0x30] sm:$0xff]
        %v2186 = vld [vmem:[#allocation22 + $0x38] sm:$0xff]
        %v2187 = vld [vmem:[#allocation22 + $0x40] sm:$0xff]
        %v2188 = vld [vmem:[#allocation22 + $0x48] sm:$0xff]
        %v2189 = vld [vmem:[#allocation22 + $0x50] sm:$0xff]
        %v2190 = vld [vmem:[#allocation22 + $0x58] sm:$0xff]
        %v2191 = vld [vmem:[#allocation22 + $0x60] sm:$0xff]
        %v2192 = vld [vmem:[#allocation22 + $0x68] sm:$0xff]
        %v2193 = vld [vmem:[#allocation22 + $0x70] sm:$0xff]
        %v2194 = vld [vmem:[#allocation22 + $0x78] sm:$0xff]
        %v2195 = vld [vmem:[#allocation22 + $0x80] sm:$0xff]
        %v2196 = vld [vmem:[#allocation22 + $0x88] sm:$0xff]
        %v2197 = vld [vmem:[#allocation22 + $0x90] sm:$0xff]
        %v2198 = vld [vmem:[#allocation22 + $0x98] sm:$0xff]
        %v2199 = vld [vmem:[#allocation22 + $0xa0] sm:$0xff]
        %v2200 = vld [vmem:[#allocation22 + $0xa8] sm:$0xff]
        %v2201 = vld [vmem:[#allocation22 + $0xb0] sm:$0xff]
        %v2202 = vld [vmem:[#allocation22 + $0xb8] sm:$0xff]
        %v2203 = vld [vmem:[#allocation22 + $0xc0] sm:$0xff]
        %v2204 = vld [vmem:[#allocation22 + $0xc8] sm:$0xff]
        %v2205 = vld [vmem:[#allocation22 + $0xd0] sm:$0xff]
        %v2206 = vld [vmem:[#allocation22 + $0xd8] sm:$0xff]
        %v2207 = vld [vmem:[#allocation22 + $0xe0] sm:$0xff]
        %v2208 = vld [vmem:[#allocation22 + $0xe8] sm:$0xff]
        %v2209 = vld [vmem:[#allocation22 + $0xf0] sm:$0xff]
        %v2210 = vld [vmem:[#allocation22 + $0xf8] sm:$0xff]
        %v2211 = vld [vmem:[#allocation22 + $0x100] sm:$0xff]
        %v2212 = vld [vmem:[#allocation22 + $0x108] sm:$0xff]
        %v2213 = vld [vmem:[#allocation22 + $0x110] sm:$0xff]
        %v2214 = vld [vmem:[#allocation22 + $0x118] sm:$0xff]
        %v2215 = vld [vmem:[#allocation22 + $0x120] sm:$0xff]
        %v2216 = vld [vmem:[#allocation22 + $0x128] sm:$0xff]
        %v2217 = vld [vmem:[#allocation22 + $0x130] sm:$0xff]
        %v2218 = vld [vmem:[#allocation22 + $0x138] sm:$0xff]
        %v2219 = vld [vmem:[#allocation22 + $0x140] sm:$0xff]
        %v2220 = vld [vmem:[#allocation22 + $0x148] sm:$0xff]
        %v2221 = vld [vmem:[#allocation22 + $0x150] sm:$0xff]
        %v2222 = vld [vmem:[#allocation22 + $0x158] sm:$0xff]
        %v2223 = vld [vmem:[#allocation22 + $0x160] sm:$0xff]
        %v2224 = vld [vmem:[#allocation22 + $0x168] sm:$0xff]
        %v2225 = vld [vmem:[#allocation22 + $0x170] sm:$0xff]
        %v2226 = vld [vmem:[#allocation22 + $0x178] sm:$0xff]
        %v2227 = vld [vmem:[#allocation22 + $0x180] sm:$0xff]
        %v2228 = vld [vmem:[#allocation22 + $0x188] sm:$0xff]
        %v2229 = vld [vmem:[#allocation22 + $0x190] sm:$0xff]
        %v2230 = vld [vmem:[#allocation22 + $0x198] sm:$0xff]
        %v2231 = vld [vmem:[#allocation22 + $0x1a0] sm:$0xff]
        %v2232 = vld [vmem:[#allocation22 + $0x1a8] sm:$0xff]
        %v2233 = vld [vmem:[#allocation22 + $0x1b0] sm:$0xff]
        %v2234 = vld [vmem:[#allocation22 + $0x1b8] sm:$0xff]
        %v2235 = vld [vmem:[#allocation22 + $0x1c0] sm:$0xff]
        %v2236 = vld [vmem:[#allocation22 + $0x1c8] sm:$0xff]
        %v2237 = vld [vmem:[#allocation22 + $0x1d0] sm:$0xff]
        %v2238 = vld [vmem:[#allocation22 + $0x1d8] sm:$0xff]
        %v2239 = vld [vmem:[#allocation22 + $0x1e0] sm:$0xff]
        %v2240 = vld [vmem:[#allocation22 + $0x1e8] sm:$0xff]
        %v2241 = vld [vmem:[#allocation22 + $0x1f0] sm:$0xff]
        %v2242 = vld [vmem:[#allocation22 + $0x1f8] sm:$0xff]
        %v2243 = vld [vmem:[#allocation23] sm:$0x1]
        %v2245 = vlaneseq
        %v2246 = vshrl.u32 %v2245, 7
        %v2247 = vsub.s32 0, %v2246
        %v2248 = vrot.slane %v2243, %v2247
        %2250 = vmatprep.subr.mxu0 0.0
        %2251 = vmatpush1.msra.mxu0 %v2179
        %2252 = vmatprep.subr.mxu0 0.0
        %2253 = vmatpush1.msra.mxu0 %v2180
        %2254 = vmatprep.subr.mxu0 0.0
        %2255 = vmatpush1.msra.mxu0 %v2181
        %2256 = vmatprep.subr.mxu0 0.0
        %2257 = vmatpush1.msra.mxu0 %v2182
        %2258 = vmatprep.subr.mxu0 0.0
        %2259 = vmatpush1.msra.mxu0 %v2183
        %2260 = vmatprep.subr.mxu0 0.0
        %2261 = vmatpush1.msra.mxu0 %v2184
        %2262 = vmatprep.subr.mxu0 0.0
        %2263 = vmatpush1.msra.mxu0 %v2185
        %2264 = vmatprep.subr.mxu0 0.0
        %2265 = vmatpush1.msra.mxu0 %v2186
        %2266 = vmatprep.subr.mxu0 0.0
        %2267 = vmatpush1.msra.mxu0 %v2187
        %2268 = vmatprep.subr.mxu0 0.0
        %2269 = vmatpush1.msra.mxu0 %v2188
        %2270 = vmatprep.subr.mxu0 0.0
        %2271 = vmatpush1.msra.mxu0 %v2189
        %2272 = vmatprep.subr.mxu0 0.0
        %2273 = vmatpush1.msra.mxu0 %v2190
        %2274 = vmatprep.subr.mxu0 0.0
        %2275 = vmatpush1.msra.mxu0 %v2191
        %2276 = vmatprep.subr.mxu0 0.0
        %2277 = vmatpush1.msra.mxu0 %v2192
        %2278 = vmatprep.subr.mxu0 0.0
        %2279 = vmatpush1.msra.mxu0 %v2193
        %2280 = vmatprep.subr.mxu0 0.0
        %2281 = vmatpush1.msra.mxu0 %v2194
        %2282 = vmatprep.subr.mxu0 0.0
        %2283 = vmatpush1.msra.mxu0 %v2195
        %2284 = vmatprep.subr.mxu0 0.0
        %2285 = vmatpush1.msra.mxu0 %v2196
        %2286 = vmatprep.subr.mxu0 0.0
        %2287 = vmatpush1.msra.mxu0 %v2197
        %2288 = vmatprep.subr.mxu0 0.0
        %2289 = vmatpush1.msra.mxu0 %v2198
        %2290 = vmatprep.subr.mxu0 0.0
        %2291 = vmatpush1.msra.mxu0 %v2199
        %2292 = vmatprep.subr.mxu0 0.0
        %2293 = vmatpush1.msra.mxu0 %v2200
        %2294 = vmatprep.subr.mxu0 0.0
        %2295 = vmatpush1.msra.mxu0 %v2201
        %2296 = vmatprep.subr.mxu0 0.0
        %2297 = vmatpush1.msra.mxu0 %v2202
        %2298 = vmatprep.subr.mxu0 0.0
        %2299 = vmatpush1.msra.mxu0 %v2203
        %2300 = vmatprep.subr.mxu0 0.0
        %2301 = vmatpush1.msra.mxu0 %v2204
        %2302 = vmatprep.subr.mxu0 0.0
        %2303 = vmatpush1.msra.mxu0 %v2205
        %2304 = vmatprep.subr.mxu0 0.0
        %2305 = vmatpush1.msra.mxu0 %v2206
        %2306 = vmatprep.subr.mxu0 0.0
        %2307 = vmatpush1.msra.mxu0 %v2207
        %2308 = vmatprep.subr.mxu0 0.0
        %2309 = vmatpush1.msra.mxu0 %v2208
        %2310 = vmatprep.subr.mxu0 0.0
        %2311 = vmatpush1.msra.mxu0 %v2209
        %2312 = vmatprep.subr.mxu0 0.0
        %2313 = vmatpush1.msra.mxu0 %v2210
        %2314 = vmatprep.mubr.f32.mxu0 %v2176
        %2315 = vmatmul.mubr.f32.gmra.mrb[0].mxu0 %v2175
        %v2316 = vpop.f32.mrb[0].mxu0
        %v2317 = vadd.f32 %v2248, %v2316
        %v2318 = vpop.f32.mrb[0].mxu0
        %2319 = vdwg.mxu0
        %2320 = vmatprep.subr.mxu0 0.0
        %2321 = vmatpush1.msra.mxu0 %v2211
        %2322 = vmatprep.subr.mxu0 0.0
        %2323 = vmatpush1.msra.mxu0 %v2212
        %2324 = vmatprep.subr.mxu0 0.0
        %2325 = vmatpush1.msra.mxu0 %v2213
        %2326 = vmatprep.subr.mxu0 0.0
        %2327 = vmatpush1.msra.mxu0 %v2214
        %2328 = vmatprep.subr.mxu0 0.0
        %2329 = vmatpush1.msra.mxu0 %v2215
        %2330 = vmatprep.subr.mxu0 0.0
        %2331 = vmatpush1.msra.mxu0 %v2216
        %2332 = vmatprep.subr.mxu0 0.0
        %2333 = vmatpush1.msra.mxu0 %v2217
        %2334 = vmatprep.subr.mxu0 0.0
        %2335 = vmatpush1.msra.mxu0 %v2218
        %2336 = vmatprep.subr.mxu0 0.0
        %2337 = vmatpush1.msra.mxu0 %v2219
        %2338 = vmatprep.subr.mxu0 0.0
        %2339 = vmatpush1.msra.mxu0 %v2220
        %2340 = vmatprep.subr.mxu0 0.0
        %2341 = vmatpush1.msra.mxu0 %v2221
        %2342 = vmatprep.subr.mxu0 0.0
        %2343 = vmatpush1.msra.mxu0 %v2222
        %2344 = vmatprep.subr.mxu0 0.0
        %2345 = vmatpush1.msra.mxu0 %v2223
        %2346 = vmatprep.subr.mxu0 0.0
        %2347 = vmatpush1.msra.mxu0 %v2224
        %2348 = vmatprep.subr.mxu0 0.0
        %2349 = vmatpush1.msra.mxu0 %v2225
        %2350 = vmatprep.subr.mxu0 0.0
        %2351 = vmatpush1.msra.mxu0 %v2226
        %2352 = vmatprep.subr.mxu0 0.0
        %2353 = vmatpush1.msra.mxu0 %v2227
        %2354 = vmatprep.subr.mxu0 0.0
        %2355 = vmatpush1.msra.mxu0 %v2228
        %2356 = vmatprep.subr.mxu0 0.0
        %2357 = vmatpush1.msra.mxu0 %v2229
        %2358 = vmatprep.subr.mxu0 0.0
        %2359 = vmatpush1.msra.mxu0 %v2230
        %2360 = vmatprep.subr.mxu0 0.0
        %2361 = vmatpush1.msra.mxu0 %v2231
        %2362 = vmatprep.subr.mxu0 0.0
        %2363 = vmatpush1.msra.mxu0 %v2232
        %2364 = vmatprep.subr.mxu0 0.0
        %2365 = vmatpush1.msra.mxu0 %v2233
        %2366 = vmatprep.subr.mxu0 0.0
        %2367 = vmatpush1.msra.mxu0 %v2234
        %2368 = vmatprep.subr.mxu0 0.0
        %2369 = vmatpush1.msra.mxu0 %v2235
        %2370 = vmatprep.subr.mxu0 0.0
        %2371 = vmatpush1.msra.mxu0 %v2236
        %2372 = vmatprep.subr.mxu0 0.0
        %2373 = vmatpush1.msra.mxu0 %v2237
        %2374 = vmatprep.subr.mxu0 0.0
        %2375 = vmatpush1.msra.mxu0 %v2238
        %2376 = vmatprep.subr.mxu0 0.0
        %2377 = vmatpush1.msra.mxu0 %v2239
        %2378 = vmatprep.subr.mxu0 0.0
        %2379 = vmatpush1.msra.mxu0 %v2240
        %2380 = vmatprep.subr.mxu0 0.0
        %2381 = vmatpush1.msra.mxu0 %v2241
        %2382 = vmatprep.subr.mxu0 0.0
        %2383 = vmatpush1.msra.mxu0 %v2242
        %2384 = vmatprep.mubr.f32.mxu0 %v2178
        %2385 = vmatmul.mubr.f32.gmra.mrb[0].mxu0 %v2177
        %v2386 = vpop.f32.mrb[0].mxu0
        %v2387 = vadd.f32 %v2317, %v2386
        %v2388 = vpop.f32.mrb[0].mxu0
        %2389 = vdwg.mxu0
        %v2390 = vadd.f32 %v1930, %v2387
        %v2391 = vld [vmem:[#allocation28] sm:$0x1]
        %v2392 = vld [vmem:[#allocation29] sm:$0x1]
        %2393 = vadd.xlane.f32.xlu0 %v2390
        %v2394 = vpop.xlane.xlu0 %2393
        %v2395 = vmul.f32 %v2394, %v1907
        %v2396 = vsub.f32 %v2390, %v2395
        %v2397 = vmul.f32 %v2396, %v2396
        %2398 = vadd.xlane.f32.xlu0 %v2397
        %v2399 = vpop.xlane.xlu0 %2398
        %v2400 = vmul.f32 %v2399, %v1907
        %v2401 = vadd.f32 %v2400, 1e-05
        %v2402 = vrsqrt.pop %v2401
        %v2403 = vmul.f32 %v2396, %v2402
        %v2405 = vlaneseq
        %v2406 = vshrl.u32 %v2405, 7
        %v2407 = vsub.s32 0, %v2406
        %v2408 = vrot.slane %v2391, %v2407
        %v2410 = vmul.f32 %v2403, %v2408
        %v2412 = vlaneseq
        %v2413 = vshrl.u32 %v2412, 7
        %v2414 = vsub.s32 0, %v2413
        %v2415 = vrot.slane %v2392, %v2414
        %v2417 = vadd.f32 %v2410, %v2415
        %2418 = vst [vmem:[%s842] sm:$0xff] %v2417
        %s2419 = sand.u32 %s442, 1
        %s2420 = scalar_lea.sflag [#allocation4], %s2419
        %s2421 = sand.u32 %s442, 1
        %s2422 = smul.addr %s2421, 8
        %s2423 = scalar_lea.vmem [#allocation31], %s2422
        // Predicated region
        $region165: #{tpu_custom_call.1} parent=91 // pred_check
          %p2424 = pneg %p452
        $region166: #{tpu_custom_call.1} parent=91 // pred_check_branch
          %2426 = sbr.rel (%p2424) target = $region168
        $region167: #{tpu_custom_call.1} parent=91 // pred_region
          %s2428 = ssub.s32 128, 128
          %2429 = vsyncadd %s2420, %s2428
          %s2430 = smul.addr %s46, 128
          %s2431 = scalar_lea.hbm %s18, %s2430
          %s2433 = sshll.u32 %s2423, 4
          %s2434 = int_to_ptr.vmem [resolvable:$true] %s2433
          %2436 = dma.vmem_to_hbm [thread:$0]  %s2434, 128, %s2431, %s2420
        $region168: #{tpu_custom_call.1} parent=91 // pred_fallthru
          _
      $region92: #{tpu_custom_call.1} parent=5 // pred_fallthru
        _
      %p2437 = scmp.le.s32.totalorder 2, %s41
      // Predicated region
      $region169: #{tpu_custom_call.1} parent=5 // pred_check
        %p2438 = pneg %p2437
      $region170: #{tpu_custom_call.1} parent=5 // pred_check_branch
        %2440 = sbr.rel (%p2438) target = $region172
      $region171: #{tpu_custom_call.1} parent=5 // pred_region
        %s2441 = ssub.s32 %s41, 2
        // Predicated region
        $region173: #{tpu_custom_call.1} parent=171 // pred_check
          %p2442 = pneg %p458
        $region174: #{tpu_custom_call.1} parent=171 // pred_check_branch
          %2444 = sbr.rel (%p2442) target = $region176
        $region175: #{tpu_custom_call.1} parent=171 // pred_region
          %s2445 = sand.u32 %s443, 1
          %s2446 = scalar_lea.sflag [#allocation4], %s2445
          %s2447 = sand.u32 %s443, 1
          %s2448 = smul.addr %s2447, 8
          %s2449 = scalar_lea.vmem [#allocation31], %s2448
          %2450 = dma.done %s2446, 128
        $region176: #{tpu_custom_call.1} parent=171 // pred_fallthru
          _
      $region172: #{tpu_custom_call.1} parent=5 // pred_fallthru
        _
    $region6: #{tpu_custom_call.1} parent=1 // loop_footer
      %s45 = sadd.s32 1, %s41
    $region7: #{tpu_custom_call.1} parent=1 // loop_footer_branch
      %40 = sbr.rel target = $region3
    $region8: #{tpu_custom_call.1} parent=1 // loop_exit
      _
    %2451 = vsyncpa [#allocation3], 1
    %s2452 = scalar_lea.sflag [#allocation3], 1
    %2453 = vsyncpa %s2452, 1
    %2454 = vsyncpa [#allocation6], 1
    %s2455 = scalar_lea.sflag [#allocation6], 1
    %2456 = vsyncpa %s2455, 1
    %2457 = vsyncpa [#allocation9], 1
    %2458 = vsyncpa [#allocation12], 1
    %2459 = vsyncpa [#allocation15], 1
    %2460 = vsyncpa [#allocation18], 1
    %2461 = vsyncpa [#allocation21], 1
    %2462 = vsyncpa [#allocation24], 1
    %2463 = vsyncpa [#allocation27], 1
    %2464 = vsyncpa [#allocation30], 1
    %2465 = vsyncpa [#allocation4], 1
    %s2466 = scalar_lea.sflag [#allocation4], 1
    %2467 = vsyncpa %s2466, 1

</llo_original>
